<compile_context>
chip_gen: v7x
topology: tpu7x:2x2x1
jax: 0.10.0
libtpu: 0.0.40
codegen_flags: <defaults>
</compile_context>

<pallas_src>
import functools
import math

import jax
import jax.numpy as jnp
from jax.experimental import pallas as pl
from jax.experimental.pallas import tpu as pltpu


def _layernorm(x, gamma, beta, eps=1e-5):
    mean = jnp.mean(x, axis=-1, keepdims=True)
    var = jnp.mean((x - mean) ** 2, axis=-1, keepdims=True)
    return (x - mean) * jax.lax.rsqrt(var + eps) * gamma + beta


# --------------------------- attention (x -> x1) ----------------------------
def xattn_kernel(
    gates_ref,                 # SMEM (2,): [tanh(attn_gate), tanh(ff_gate)]
    x_ref,                     # (1, Tt, dim)        f32
    k_ref,                     # (1, H, Dh, Tm)      bf16   (lane-dense in Tm)
    v_ref,                     # (1, H, Dh, Tm)      bf16
    ln1_g_ref, ln1_b_ref,      # (1, dim)            f32
    wq_ref,                    # (dim, hidden)       bf16
    wo_ref,                    # (hidden, dim)       bf16
    o_ref,                     # (1, Tt, dim)        f32   -> x1
    *, heads, dim_head):
    H, Dh = heads, dim_head
    hidden = H * Dh
    inv_scale = 1.0 / math.sqrt(Dh)

    x = x_ref[0]                                                      # (Tt, dim) f32
    tt = x.shape[0]

    # ---- MaskedCrossAttention (media_locations masks are no-ops in the ref) ----
    xn = _layernorm(x, ln1_g_ref[0], ln1_b_ref[0]).astype(jnp.bfloat16)
    q = jnp.dot(xn, wq_ref[...], preferred_element_type=jnp.float32)  # (Tt, hidden)
    q = pltpu.einshape("thd->htd",
                       q.astype(jnp.bfloat16).reshape(tt, H, Dh))     # (H, Tt, Dh)

    k = k_ref[0]                                                      # (H, Dh, Tm)
    v = v_ref[0]                                                      # (H, Dh, Tm)
    s = jnp.einsum("htd,hds->hts", q, k,
                   preferred_element_type=jnp.float32)                # (H, Tt, Tm)
    s = s - jnp.max(s, axis=-1, keepdims=True)
    e = jnp.exp(s)
    denom = jnp.sum(e, axis=-1, keepdims=True)
    # divide-by-sqrt(Dh) AFTER softmax (as written in the module), folded into
    # the EUP reciprocal so the VPU never sees a full (H, Tt, Tm) divide.
    p = e * (inv_scale * pl.reciprocal(denom, approx=True))
    o_h = jnp.einsum("hts,hds->htd", p.astype(jnp.bfloat16), v,
                     preferred_element_type=jnp.float32)              # (H, Tt, Dh)
    attn_cat = pltpu.einshape("htd->thd",
                              o_h.astype(jnp.bfloat16)).reshape(tt, hidden)
    attn_out = jnp.dot(attn_cat, wo_ref[...],
                       preferred_element_type=jnp.float32)            # (Tt, dim)

    o_ref[0] = (x + gates_ref[0] * attn_out).astype(o_ref.dtype)


# ------------------------- FeedForward (x1 -> out) --------------------------
def ff_kernel(
    gates_ref,                 # SMEM (2,)
    x1_ref,                    # (tile_r, dim)       f32
    ln2_g_ref, ln2_b_ref,      # (1, dim)            f32
    w1_ref,                    # (dim, ff_chunk)     bf16   streamed from HBM
    w2_ref,                    # (ff_chunk, dim)     bf16   streamed from HBM
    o_ref,                     # (tile_r, dim)       f32
    acc_ref,                   # VMEM (tile_r, dim)  f32    accumulator
    xn2_ref):                  # VMEM (tile_r, dim)  bf16   LN(x1), computed once
    c = pl.program_id(1)

    @pl.when(c == 0)
    def _init():
        acc_ref[...] = jnp.zeros_like(acc_ref)
        xn2_ref[...] = _layernorm(
            x1_ref[...], ln2_g_ref[0], ln2_b_ref[0]).astype(xn2_ref.dtype)

    h = jnp.dot(xn2_ref[...], w1_ref[...],
                preferred_element_type=jnp.float32)                   # (tile_r, chunk)
    h = jax.nn.gelu(h, approximate=False)                             # exact (erf) GELU
    acc_ref[...] += jnp.dot(h.astype(jnp.bfloat16), w2_ref[...],
                            preferred_element_type=jnp.float32)

    @pl.when(c == pl.num_programs(1) - 1)
    def _finalize():
        o_ref[...] = (x1_ref[...] + gates_ref[1] * acc_ref[...]).astype(o_ref.dtype)


# --------------------------------- wrapper -----------------------------------
def _pick_tile(total, target):
    """Largest multiple of 8 that divides `total` and is <= target (or total)."""
    if total <= target:
        return total
    for cand in range(target - target % 8, 7, -8):
        if total % cand == 0:
            return cand
    return total


def _pick_chunk(total, target):
    """Largest multiple of 128 that divides `total` and is <= target (or total)."""
    if total <= target:
        return total
    for cand in range(target - target % 128, 127, -128):
        if total % cand == 0:
            return cand
    return total


def _tpu_config():
    """Per-generation sizing: VMEM budget, T-tile target, FF-chunk target."""
    vmem_cap = 128 * 1024 * 1024
    try:
        vmem_cap = int(pltpu.get_tpu_info().vmem_capacity_bytes)
    except Exception:
        pass  # conservative default (v5e/v6e physical VMEM)
    is_v5 = False
    try:
        is_v5 = "v5" in jax.devices()[0].device_kind.lower()
    except Exception:
        pass
    small_vmem = vmem_cap <= 64 * 1024 * 1024                 # v7x-class
    tile_t_target = 128 if is_v5 else 256                     # MXU rows per tile
    ff_chunk_target = 512 if small_vmem else (1024 if is_v5 else 2048)
    vmem_limit = max(32 * 1024 * 1024,
                     min(int(vmem_cap * 0.85), vmem_cap - 8 * 1024 * 1024))
    return tile_t_target, ff_chunk_target, vmem_limit


def gated_cross_attention_block(x, media, media_locations, params, *, heads, dim_head):
    # media_locations kept for API parity: the masks built from it are discarded
    # (non in-place masked_fill) in the reference forward, so it has no effect.
    del media_locations
    B, T_text, dim = x.shape
    _, T_img, n, dim_media = media.shape
    Tm = T_img * n
    hidden = heads * dim_head
    inner = params["w_ff1"].shape[1]
    bf16 = jnp.bfloat16

    tile_t_target, ff_chunk_target, vmem_limit = _tpu_config()
    # TODO(synk): pad T_text to a multiple of the tile target (and mask the tail)
    # instead of falling back to smaller divisors for awkward sequence lengths.
    tile_t = _pick_tile(T_text, tile_t_target)
    ff_chunk = _pick_chunk(inner, ff_chunk_target)
    rows = B * T_text
    tile_r = _pick_tile(rows, 512)

    # ---- weights / params (MXU inputs in bf16) ----
    wq = params["w_q"].astype(bf16)
    wkv = jnp.concatenate([params["w_k"], params["w_v"]], axis=1).astype(bf16)
    wo = params["w_o"].astype(bf16)
    w1 = params["w_ff1"].astype(bf16)
    w2 = params["w_ff2"].astype(bf16)
    ln1_g = params["ln1_g"].reshape(1, dim).astype(jnp.float32)
    ln1_b = params["ln1_b"].reshape(1, dim).astype(jnp.float32)
    ln2_g = params["ln2_g"].reshape(1, dim).astype(jnp.float32)
    ln2_b = params["ln2_b"].reshape(1, dim).astype(jnp.float32)
    # scalar glue: tanh of the (1,)-shaped gate params
    gates = jnp.tanh(
        jnp.concatenate([params["attn_gate"], params["ff_gate"]]).astype(jnp.float32))

    # ---- K/V projection hoisted out of the per-tile kernel (computed once per
    #      batch element as a wrapper matmul, per review).  Lane-dense layout:
    #      (B, H, Dh, Tm) so the media/sequence axis sits on the 128-lane dim.
    media_flat = media.reshape(B, Tm, dim_media).astype(bf16)
    kv = jnp.einsum("bmd,dh->bmh", media_flat, wkv,
                    preferred_element_type=jnp.float32)               # (B, Tm, 2*hidden)
    k = kv[..., :hidden].astype(bf16).reshape(B, Tm, heads, dim_head)
    v = kv[..., hidden:].astype(bf16).reshape(B, Tm, heads, dim_head)
    k = jnp.transpose(k, (0, 2, 3, 1))                                # (B, H, Dh, Tm)
    v = jnp.transpose(v, (0, 2, 3, 1))                                # (B, H, Dh, Tm)

    # ---- kernel 1: masked cross-attention + gated residual -> x1 ----
    n_t = T_text // tile_t
    x1 = pl.pallas_call(
        functools.partial(xattn_kernel, heads=heads, dim_head=dim_head),
        out_shape=jax.ShapeDtypeStruct((B, T_text, dim), jnp.float32),
        grid=(B, n_t),
        in_specs=[
            pl.BlockSpec(memory_space=pltpu.MemorySpace.SMEM),                   # gates
            pl.BlockSpec((1, tile_t, dim), lambda b, t: (b, t, 0)),              # x
            pl.BlockSpec((1, heads, dim_head, Tm), lambda b, t: (b, 0, 0, 0)),   # K
            pl.BlockSpec((1, heads, dim_head, Tm), lambda b, t: (b, 0, 0, 0)),   # V
            pl.BlockSpec((1, dim), lambda b, t: (0, 0)),                         # ln1_g
            pl.BlockSpec((1, dim), lambda b, t: (0, 0)),                         # ln1_b
            pl.BlockSpec((dim, hidden), lambda b, t: (0, 0)),                    # Wq
            pl.BlockSpec((hidden, dim), lambda b, t: (0, 0)),                    # Wo
        ],
        out_specs=pl.BlockSpec((1, tile_t, dim), lambda b, t: (b, t, 0)),
        compiler_params=pltpu.CompilerParams(
            dimension_semantics=("parallel", "parallel"),   # no cross-tile deps
            vmem_limit_bytes=vmem_limit),
    )(gates, x, k, v, ln1_g, ln1_b, wq, wo)

    # ---- kernel 2: FeedForward with HBM-streamed W1/W2 chunks -> out ----
    # TODO(synk): at real Flamingo dims, reorder to a weight-stationary sweep
    # (chunk slowest, accumulate into the aliased output) so each FF-weight
    # chunk is DMA'd once across all row tiles.
    x1_rows = x1.reshape(rows, dim)
    n_r = rows // tile_r
    n_c = inner // ff_chunk
    out_rows = pl.pallas_call(
        ff_kernel,
        out_shape=jax.ShapeDtypeStruct((rows, dim), x.dtype),
        grid=(n_r, n_c),
        in_specs=[
            pl.BlockSpec(memory_space=pltpu.MemorySpace.SMEM),       # gates
            pl.BlockSpec((tile_r, dim), lambda r, c: (r, 0)),        # x1 rows
            pl.BlockSpec((1, dim), lambda r, c: (0, 0)),             # ln2_g
            pl.BlockSpec((1, dim), lambda r, c: (0, 0)),             # ln2_b
            pl.BlockSpec((dim, ff_chunk), lambda r, c: (0, c)),      # W1 chunk (streamed)
            pl.BlockSpec((ff_chunk, dim), lambda r, c: (c, 0)),      # W2 chunk (streamed)
        ],
        out_specs=pl.BlockSpec((tile_r, dim), lambda r, c: (r, 0)),
        scratch_shapes=[pltpu.VMEM((tile_r, dim), jnp.float32),      # FF accumulator
                        pltpu.VMEM((tile_r, dim), bf16)],            # LN(x1) cache
        compiler_params=pltpu.CompilerParams(
            dimension_semantics=("parallel", "arbitrary"),
            vmem_limit_bytes=vmem_limit),
    )(gates, x1_rows, ln2_g, ln2_b, w1, w2)

    return out_rows.reshape(B, T_text, dim)


def reference_forward(x, media, params, *, heads, dim_head):
    """Pure-JAX (f32) replica of the PyTorch forward (for verification)."""
    B, T, dim = x.shape
    _, Ti, n, dm = media.shape
    mf = media.reshape(B, Ti * n, dm)

    def ln(y, g, b):
        mu = y.mean(-1, keepdims=True)
        var = ((y - mu) ** 2).mean(-1, keepdims=True)
        return (y - mu) / jnp.sqrt(var + 1e-5) * g + b

    xn = ln(x, params["ln1_g"], params["ln1_b"])
    q = xn @ params["w_q"]
    k = mf @ params["w_k"]
    v = mf @ params["w_v"]
    H, Dh = heads, dim_head
    q = q.reshape(B, T, H, Dh).transpose(0, 2, 1, 3)
    k = k.reshape(B, Ti * n, H, Dh).transpose(0, 2, 1, 3)
    v = v.reshape(B, Ti * n, H, Dh).transpose(0, 2, 1, 3)
    a = q @ jnp.swapaxes(k, -1, -2)
    a = a - a.max(-1, keepdims=True)
    a = jax.nn.softmax(a, axis=-1) / math.sqrt(Dh)
    o = (a @ v).transpose(0, 2, 1, 3).reshape(B, T, H * Dh) @ params["w_o"]
    x1 = x + jnp.tanh(params["attn_gate"]) * o
    xn2 = ln(x1, params["ln2_g"], params["ln2_b"])
    ff = jax.nn.gelu(xn2 @ params["w_ff1"], approximate=False) @ params["w_ff2"]
    return x1 + jnp.tanh(params["ff_gate"]) * ff


if __name__ == "__main__":
    # Small shapes consistent with the module.
    B, T_text, T_img, n = 2, 8, 2, 4
    dim, dim_media = 32, 16
    dim_head, heads, ff_mult = 8, 4, 4
    hidden = dim_head * heads
    inner = dim * ff_mult

    key = jax.random.PRNGKey(0)
    ks = jax.random.split(key, 10)

    params = {
        "ln1_g": jnp.ones((dim,), jnp.float32),
        "ln1_b": jnp.zeros((dim,), jnp.float32),
        "w_q": 0.1 * jax.random.normal(ks[0], (dim, hidden), jnp.float32),
        "w_k": 0.1 * jax.random.normal(ks[1], (dim_media, hidden), jnp.float32),
        "w_v": 0.1 * jax.random.normal(ks[2], (dim_media, hidden), jnp.float32),
        "w_o": 0.1 * jax.random.normal(ks[3], (hidden, dim), jnp.float32),
        "ln2_g": jnp.ones((dim,), jnp.float32),
        "ln2_b": jnp.zeros((dim,), jnp.float32),
        "w_ff1": 0.1 * jax.random.normal(ks[4], (dim, inner), jnp.float32),
        "w_ff2": 0.1 * jax.random.normal(ks[5], (inner, dim), jnp.float32),
        # PyTorch inits these to 0 (identity block); nonzero to exercise the math.
        "attn_gate": jnp.array([0.3], jnp.float32),
        "ff_gate": jnp.array([-0.2], jnp.float32),
    }

    x = jax.random.normal(ks[6], (B, T_text, dim), jnp.float32)
    media = jax.random.normal(ks[7], (B, T_img, n, dim_media), jnp.float32)
    media_locations = (jax.random.uniform(ks[8], (B, T_text)) > 0.7)  # unused (see notes)

    out = gated_cross_attention_block(
        x, media, media_locations, params, heads=heads, dim_head=dim_head
    )
    out = jax.block_until_ready(out)

    ref = reference_forward(x, media, params, heads=heads, dim_head=dim_head)
    assert out.shape == (B, T_text, dim)
    # bf16 matmul inputs (f32 accumulation) + approx reciprocal -> relaxed tolerance.
    assert jnp.allclose(out, ref, atol=2e-2, rtol=2e-2), (
        f"max abs err = {jnp.max(jnp.abs(out - ref))}"
    )
    print("KERNEL_OK")
</pallas_src>

<mosaic_0001>
module attributes {stable_mosaic.version = 11 : i64} {
  func.func @xattn_kernel(%arg0: i32, %arg1: i32, %arg2: memref<2xf32, #tpu.memory_space<smem>>, %arg3: memref<1x8x32xf32, #tpu.memory_space<vmem>>, %arg4: memref<1x4x8x8xbf16, #tpu.memory_space<vmem>>, %arg5: memref<1x4x8x8xbf16, #tpu.memory_space<vmem>>, %arg6: memref<1x32xf32, #tpu.memory_space<vmem>>, %arg7: memref<1x32xf32, #tpu.memory_space<vmem>>, %arg8: memref<32x32xbf16, #tpu.memory_space<vmem>>, %arg9: memref<32x32xbf16, #tpu.memory_space<vmem>>, %arg10: memref<1x8x32xf32, #tpu.memory_space<vmem>>) attributes {dimension_semantics = [#tpu.dimension_semantics<parallel>, #tpu.dimension_semantics<parallel>], iteration_bounds = array<i64: 2, 1>, scalar_prefetch = 0 : i64, scratch_operands = 0 : i64, tpu.core_type = #tpu.core_type<tc>, window_params = [{transform_indices = @transform_0, window_bounds = array<i64: 2>}, {transform_indices = @transform_1, window_bounds = array<i64: 1, 8, 32>}, {transform_indices = @transform_2, window_bounds = array<i64: 1, 4, 8, 8>}, {transform_indices = @transform_3, window_bounds = array<i64: 1, 4, 8, 8>}, {pipeline_mode = #tpu.pipeline_mode<synchronous>, transform_indices = @transform_4, window_bounds = array<i64: 1, 32>}, {pipeline_mode = #tpu.pipeline_mode<synchronous>, transform_indices = @transform_5, window_bounds = array<i64: 1, 32>}, {pipeline_mode = #tpu.pipeline_mode<synchronous>, transform_indices = @transform_6, window_bounds = array<i64: 32, 32>}, {pipeline_mode = #tpu.pipeline_mode<synchronous>, transform_indices = @transform_7, window_bounds = array<i64: 32, 32>}, {transform_indices = @transform_8, window_bounds = array<i64: 1, 8, 32>}]} {
    %c0 = arith.constant 0 : index
    %c0_0 = arith.constant 0 : index
    %c0_1 = arith.constant 0 : index
    %0 = vector.load %arg3[%c0, %c0_0, %c0_1] : memref<1x8x32xf32, #tpu.memory_space<vmem>>, vector<1x8x32xf32>
    %1 = vector.shape_cast %0 : vector<1x8x32xf32> to vector<8x32xf32>
    %c0_2 = arith.constant 0 : index
    %c0_3 = arith.constant 0 : index
    %2 = vector.load %arg6[%c0_2, %c0_3] : memref<1x32xf32, #tpu.memory_space<vmem>>, vector<1x32xf32>
    %3 = vector.shape_cast %2 : vector<1x32xf32> to vector<32xf32>
    %c0_4 = arith.constant 0 : index
    %c0_5 = arith.constant 0 : index
    %4 = vector.load %arg7[%c0_4, %c0_5] : memref<1x32xf32, #tpu.memory_space<vmem>>, vector<1x32xf32>
    %5 = vector.shape_cast %4 : vector<1x32xf32> to vector<32xf32>
    %cst = arith.constant dense<0.000000e+00> : vector<8xf32>
    %6 = vector.multi_reduction <add>, %1, %cst [1] : vector<8x32xf32> to vector<8xf32>
    %7 = vector.shape_cast %6 : vector<8xf32> to vector<8x1xf32>
    %cst_6 = arith.constant 3.200000e+01 : f32
    %8 = vector.broadcast %cst_6 : f32 to vector<8x1xf32>
    %9 = arith.divf %7, %8 : vector<8x1xf32>
    %10 = vector.broadcast %9 : vector<8x1xf32> to vector<8x32xf32>
    %11 = arith.subf %1, %10 : vector<8x32xf32>
    %12 = arith.mulf %11, %11 : vector<8x32xf32>
    %cst_7 = arith.constant dense<0.000000e+00> : vector<8xf32>
    %13 = vector.multi_reduction <add>, %12, %cst_7 [1] : vector<8x32xf32> to vector<8xf32>
    %14 = vector.shape_cast %13 : vector<8xf32> to vector<8x1xf32>
    %cst_8 = arith.constant 3.200000e+01 : f32
    %15 = vector.broadcast %cst_8 : f32 to vector<8x1xf32>
    %16 = arith.divf %14, %15 : vector<8x1xf32>
    %17 = vector.broadcast %9 : vector<8x1xf32> to vector<8x32xf32>
    %18 = arith.subf %1, %17 : vector<8x32xf32>
    %cst_9 = arith.constant 9.99999974E-6 : f32
    %19 = vector.broadcast %cst_9 : f32 to vector<8x1xf32>
    %20 = arith.addf %16, %19 : vector<8x1xf32>
    %21 = math.rsqrt %20 : vector<8x1xf32>
    %22 = vector.broadcast %21 : vector<8x1xf32> to vector<8x32xf32>
    %23 = arith.mulf %18, %22 : vector<8x32xf32>
    %24 = vector.shape_cast %3 : vector<32xf32> to vector<1x32xf32>
    %25 = vector.broadcast %24 : vector<1x32xf32> to vector<8x32xf32>
    %26 = arith.mulf %23, %25 : vector<8x32xf32>
    %27 = vector.shape_cast %5 : vector<32xf32> to vector<1x32xf32>
    %28 = vector.broadcast %27 : vector<1x32xf32> to vector<8x32xf32>
    %29 = arith.addf %26, %28 : vector<8x32xf32>
    %30 = arith.truncf %29 : vector<8x32xf32> to vector<8x32xbf16>
    %c0_10 = arith.constant 0 : index
    %c0_11 = arith.constant 0 : index
    %31 = vector.load %arg8[%c0_10, %c0_11] : memref<32x32xbf16, #tpu.memory_space<vmem>>, vector<32x32xbf16>
    %cst_12 = arith.constant dense<0.000000e+00> : vector<8x32xf32>
    %32 = tpu.matmul %30, %31, %cst_12 {dimension_numbers = #tpu.dot_dimension_numbers<[1], [0], [0], [1], [0, 0, 1, 1], [], []>} : vector<8x32xbf16>, vector<32x32xbf16>, vector<8x32xf32> -> vector<8x32xf32>
    %33 = arith.truncf %32 : vector<8x32xf32> to vector<8x32xbf16>
    %34 = vector.shape_cast %33 : vector<8x32xbf16> to vector<8x4x8xbf16>
    %35 = tpu.transpose %34, [1, 0, 2] : vector<8x4x8xbf16> -> vector<4x8x8xbf16>
    %c0_13 = arith.constant 0 : index
    %c0_14 = arith.constant 0 : index
    %c0_15 = arith.constant 0 : index
    %c0_16 = arith.constant 0 : index
    %36 = vector.load %arg4[%c0_13, %c0_14, %c0_15, %c0_16] : memref<1x4x8x8xbf16, #tpu.memory_space<vmem>>, vector<1x4x8x8xbf16>
    %37 = vector.shape_cast %36 : vector<1x4x8x8xbf16> to vector<4x8x8xbf16>
    %c0_17 = arith.constant 0 : index
    %c0_18 = arith.constant 0 : index
    %c0_19 = arith.constant 0 : index
    %c0_20 = arith.constant 0 : index
    %38 = vector.load %arg5[%c0_17, %c0_18, %c0_19, %c0_20] : memref<1x4x8x8xbf16, #tpu.memory_space<vmem>>, vector<1x4x8x8xbf16>
    %39 = vector.shape_cast %38 : vector<1x4x8x8xbf16> to vector<4x8x8xbf16>
    "tpu.trace_start"() <{level = 10 : i32, message = "htd,hds->hts"}> : () -> ()
    %cst_21 = arith.constant dense<0.000000e+00> : vector<4x8x8xf32>
    %40 = tpu.matmul %35, %37, %cst_21 {dimension_numbers = #tpu.dot_dimension_numbers<[2], [1], [1], [2], [0, 0, 0, 1, 1, 2], [0], [0]>} : vector<4x8x8xbf16>, vector<4x8x8xbf16>, vector<4x8x8xf32> -> vector<4x8x8xf32>
    "tpu.trace_stop"() : () -> ()
    %cst_22 = arith.constant dense<0xFF800000> : vector<4x8xf32>
    %41 = vector.multi_reduction <maximumf>, %40, %cst_22 [2] : vector<4x8x8xf32> to vector<4x8xf32>
    %42 = vector.shape_cast %41 : vector<4x8xf32> to vector<4x8x1xf32>
    %43 = vector.broadcast %42 : vector<4x8x1xf32> to vector<4x8x8xf32>
    %44 = arith.subf %40, %43 : vector<4x8x8xf32>
    %45 = math.exp %44 : vector<4x8x8xf32>
    %cst_23 = arith.constant dense<0.000000e+00> : vector<4x8xf32>
    %46 = vector.multi_reduction <add>, %45, %cst_23 [2] : vector<4x8x8xf32> to vector<4x8xf32>
    %47 = vector.shape_cast %46 : vector<4x8xf32> to vector<4x8x1xf32>
    %48 = tpu.reciprocal %47 {approx = true} : vector<4x8x1xf32> -> vector<4x8x1xf32>
    %cst_24 = arith.constant 0.353553385 : f32
    %49 = vector.broadcast %cst_24 : f32 to vector<4x8x1xf32>
    %50 = arith.mulf %49, %48 : vector<4x8x1xf32>
    %51 = vector.broadcast %50 : vector<4x8x1xf32> to vector<4x8x8xf32>
    %52 = arith.mulf %45, %51 : vector<4x8x8xf32>
    %53 = arith.truncf %52 : vector<4x8x8xf32> to vector<4x8x8xbf16>
    "tpu.trace_start"() <{level = 10 : i32, message = "hts,hds->htd"}> : () -> ()
    %cst_25 = arith.constant dense<0.000000e+00> : vector<4x8x8xf32>
    %54 = tpu.matmul %53, %39, %cst_25 {dimension_numbers = #tpu.dot_dimension_numbers<[2], [2], [1], [1], [0, 0, 0, 1, 1, 1], [0], [0]>} : vector<4x8x8xbf16>, vector<4x8x8xbf16>, vector<4x8x8xf32> -> vector<4x8x8xf32>
    "tpu.trace_stop"() : () -> ()
    %55 = arith.truncf %54 : vector<4x8x8xf32> to vector<4x8x8xbf16>
    %56 = tpu.transpose %55, [1, 0, 2] : vector<4x8x8xbf16> -> vector<8x4x8xbf16>
    %57 = vector.shape_cast %56 : vector<8x4x8xbf16> to vector<8x32xbf16>
    %c0_26 = arith.constant 0 : index
    %c0_27 = arith.constant 0 : index
    %58 = vector.load %arg9[%c0_26, %c0_27] : memref<32x32xbf16, #tpu.memory_space<vmem>>, vector<32x32xbf16>
    %cst_28 = arith.constant dense<0.000000e+00> : vector<8x32xf32>
    %59 = tpu.matmul %57, %58, %cst_28 {dimension_numbers = #tpu.dot_dimension_numbers<[1], [0], [0], [1], [0, 0, 1, 1], [], []>} : vector<8x32xbf16>, vector<32x32xbf16>, vector<8x32xf32> -> vector<8x32xf32>
    %c0_29 = arith.constant 0 : index
    %60 = memref.load %arg2[%c0_29] : memref<2xf32, #tpu.memory_space<smem>>
    %61 = vector.broadcast %60 : f32 to vector<8x32xf32>
    %62 = arith.mulf %61, %59 : vector<8x32xf32>
    %63 = arith.addf %1, %62 : vector<8x32xf32>
    %c0_30 = arith.constant 0 : index
    %c0_31 = arith.constant 0 : index
    %c0_32 = arith.constant 0 : index
    %64 = vector.load %arg10[%c0_30, %c0_31, %c0_32] : memref<1x8x32xf32, #tpu.memory_space<vmem>>, vector<1x8x32xf32>
    %65 = vector.shape_cast %64 : vector<1x8x32xf32> to vector<8x32xf32>
    %66 = vector.shape_cast %63 : vector<8x32xf32> to vector<1x8x32xf32>
    tpu.vector_store %arg10[%c0_30, %c0_31, %c0_32], %66 {strides = array<i32>} : memref<1x8x32xf32, #tpu.memory_space<vmem>>, vector<1x8x32xf32>,
    return
  }
  func.func @transform_0(%arg0: i32, %arg1: i32) -> i32 {
    %c0_i32 = arith.constant 0 : i32
    %c0_i32_0 = arith.constant 0 : i32
    return %c0_i32 : i32
  }
  func.func @transform_1(%arg0: i32, %arg1: i32) -> (i32, i32, i32) {
    %c0_i32 = arith.constant 0 : i32
    %c0_i32_0 = arith.constant 0 : i32
    return %arg0, %arg1, %c0_i32 : i32, i32, i32
  }
  func.func @transform_2(%arg0: i32, %arg1: i32) -> (i32, i32, i32, i32) {
    %c0_i32 = arith.constant 0 : i32
    %c0_i32_0 = arith.constant 0 : i32
    %c0_i32_1 = arith.constant 0 : i32
    %c0_i32_2 = arith.constant 0 : i32
    return %arg0, %c0_i32, %c0_i32_0, %c0_i32_1 : i32, i32, i32, i32
  }
  func.func @transform_3(%arg0: i32, %arg1: i32) -> (i32, i32, i32, i32) {
    %c0_i32 = arith.constant 0 : i32
    %c0_i32_0 = arith.constant 0 : i32
    %c0_i32_1 = arith.constant 0 : i32
    %c0_i32_2 = arith.constant 0 : i32
    return %arg0, %c0_i32, %c0_i32_0, %c0_i32_1 : i32, i32, i32, i32
  }
  func.func @transform_4(%arg0: i32, %arg1: i32) -> (i32, i32) {
    %c0_i32 = arith.constant 0 : i32
    %c0_i32_0 = arith.constant 0 : i32
    %c0_i32_1 = arith.constant 0 : i32
    return %c0_i32, %c0_i32_0 : i32, i32
  }
  func.func @transform_5(%arg0: i32, %arg1: i32) -> (i32, i32) {
    %c0_i32 = arith.constant 0 : i32
    %c0_i32_0 = arith.constant 0 : i32
    %c0_i32_1 = arith.constant 0 : i32
    return %c0_i32, %c0_i32_0 : i32, i32
  }
  func.func @transform_6(%arg0: i32, %arg1: i32) -> (i32, i32) {
    %c0_i32 = arith.constant 0 : i32
    %c0_i32_0 = arith.constant 0 : i32
    %c0_i32_1 = arith.constant 0 : i32
    return %c0_i32, %c0_i32_0 : i32, i32
  }
  func.func @transform_7(%arg0: i32, %arg1: i32) -> (i32, i32) {
    %c0_i32 = arith.constant 0 : i32
    %c0_i32_0 = arith.constant 0 : i32
    %c0_i32_1 = arith.constant 0 : i32
    return %c0_i32, %c0_i32_0 : i32, i32
  }
  func.func @transform_8(%arg0: i32, %arg1: i32) -> (i32, i32, i32) {
    %c0_i32 = arith.constant 0 : i32
    %c0_i32_0 = arith.constant 0 : i32
    return %arg0, %arg1, %c0_i32 : i32, i32, i32
  }
}

</mosaic_0001>

<llo_original>
// kernel: tpu_custom_call.1
$region0: #{tpu_custom_call.1}
  #allocation0 [shape = 'u32[]', space=smem, size = 0x4, offset = 0x4, fixed_abs, tag = 'smem constant byte address 0x4 - core index']
  #allocation1 [shape = 'u32[144,128]{1,0:T(1,128)}', space=vmem, size = 0x12000, scoped, tag = 'internal scratch']
  %s0 = inlined_call_operand.hbm [shape: f32[2], index: 0, kind: input, shape index: {}]
  %s1 = inlined_call_operand.hbm [shape: f32[2,8,32], index: 1, kind: input, shape index: {}]
  %s2 = inlined_call_operand.hbm [shape: bf16[2,4,8,8], index: 2, kind: input, shape index: {}]
  %s3 = inlined_call_operand.hbm [shape: bf16[2,4,8,8], index: 3, kind: input, shape index: {}]
  %s4 = inlined_call_operand.hbm [shape: f32[1,32], index: 4, kind: input, shape index: {}]
  %s5 = inlined_call_operand.hbm [shape: f32[1,32], index: 5, kind: input, shape index: {}]
  %s6 = inlined_call_operand.hbm [shape: bf16[32,32], index: 6, kind: input, shape index: {}]
  %s7 = inlined_call_operand.hbm [shape: bf16[32,32], index: 7, kind: input, shape index: {}]
  %s8 = inlined_call_operand.hbm [shape: f32[2,8,32], index: 8, kind: output, shape index: {}]
  %s9 = sld [smem:[#allocation0]]
  $region97: #{tpu_custom_call.1} parent=0
    _
  %s11 = ssub.s32 1, %s9
  %s12 = scalar_select 0, %s11, %s9
  $region1: #{tpu_custom_call.1} parent=0
    #allocation2 [shape = 'u8[512]{0}', space=smem, size = 0x200, scoped, tag = 'input window, operand 0, single buffered']
    #allocation3 [shape = 's32[2]{0}', space=sflag, size = 0x8, scoped, tag = 'scoped memory for tpu_custom_call.1']
    #allocation4 [shape = 's32[2]{0}', space=sflag, size = 0x8, scoped, tag = 'scoped memory for tpu_custom_call.1']
    #allocation5 [shape = 's32[2]{0}', space=sflag, size = 0x8, scoped, tag = 'scoped memory for tpu_custom_call.1']
    #allocation6 [shape = 'u8[8192]{0}', space=vmem, size = 0x2000, scoped, tag = 'input window, operand 1']
    #allocation7 [shape = 'u8[16384]{0}', space=vmem, size = 0x4000, scoped, tag = 'input window, operand 2']
    #allocation8 [shape = 's32[2]{0}', space=sflag, size = 0x8, scoped, tag = 'scoped memory for tpu_custom_call.1']
    #allocation9 [shape = 'u8[16384]{0}', space=vmem, size = 0x4000, scoped, tag = 'input window, operand 3']
    #allocation10 [shape = 'u8[512]{0}', space=vmem, size = 0x400, scoped, tag = 'input window, operand 4, single buffered']
    #allocation11 [shape = 's32[1]{0}', space=sflag, size = 0x4, scoped, tag = 'scoped memory for tpu_custom_call.1']
    #allocation12 [shape = 'u8[512]{0}', space=vmem, size = 0x400, scoped, tag = 'input window, operand 5, single buffered']
    #allocation13 [shape = 'u8[8192]{0}', space=vmem, size = 0x2000, scoped, tag = 'input window, operand 6, single buffered']
    #allocation14 [shape = 's32[1]{0}', space=sflag, size = 0x4, scoped, tag = 'scoped memory for tpu_custom_call.1']
    #allocation15 [shape = 'u8[8192]{0}', space=vmem, size = 0x2000, scoped, tag = 'input window, operand 7, single buffered']
    #allocation16 [shape = 'u8[8192]{0}', space=vmem, size = 0x2000, scoped, tag = 'output window, operand 0']
    %13 = vsyncpa [#allocation5], 0
    %14 = vsyncpa [#allocation3], 0
    %s15 = scalar_lea.sflag [#allocation3], 1
    %16 = vsyncpa %s15, 0
    %17 = vsyncpa [#allocation8], 0
    %s18 = scalar_lea.sflag [#allocation8], 1
    %19 = vsyncpa %s18, 0
    %20 = vsyncpa [#allocation11], 0
    %21 = vsyncpa [#allocation14], 0
    %22 = vsyncpa [#allocation4], 0
    %s23 = scalar_lea.sflag [#allocation4], 1
    %24 = vsyncpa %s23, 0
    loop: start=0, step=1, limit=4
    $region2: #{tpu_custom_call.1} parent=1 // loop_pre_header
      _
    $region3: #{tpu_custom_call.1} parent=1 // loop_header
      %s26 = sphi 0, %s30
      %p27 = scmp.ge.s32.totalorder %s26, 4
      %s33 = sphi 0, %s45
      %s34 = sphi 0, %s41
      %s35 = sphi 0, %s33
      %s36 = sphi 0, %s34
      %s37 = sphi 0, %s35
      %s38 = sphi 0, %s36
      %s46 = sphi 0, %s46
      %s48 = sphi 0, %s46
      %s49 = sphi 0, %s48
      %s63 = sphi 0, %s49
      %s71 = sphi 0, %s73
      %s74 = sphi 0, %s71
      %s75 = sphi 0, %s74
      %s91 = sphi 0, %s75
      %s97 = sphi 0, %s99
      %s100 = sphi 0, %s97
      %s101 = sphi 0, %s100
      %s117 = sphi 0, %s101
      %s123 = sphi 0, %s125
      %s126 = sphi 0, %s123
      %s127 = sphi 0, %s126
      %s143 = sphi 0, %s127
      %s147 = sphi 0, %s147
      %s149 = sphi 0, %s147
      %s150 = sphi 0, %s149
      %s164 = sphi 0, %s150
      %s168 = sphi 0, %s168
      %s170 = sphi 0, %s168
      %s171 = sphi 0, %s170
      %s185 = sphi 0, %s171
      %s189 = sphi 0, %s189
      %s191 = sphi 0, %s189
      %s192 = sphi 0, %s191
      %s206 = sphi 0, %s192
      %s210 = sphi 0, %s210
      %s212 = sphi 0, %s210
      %s213 = sphi 0, %s212
      %s227 = sphi 0, %s213
      %s235 = sphi 0, %s237
      %s238 = sphi 0, %s235
      %s239 = sphi 0, %s238
      %s255 = sphi 0, %s239
    $region4: #{tpu_custom_call.1} parent=1 // loop_header_branch
      %29 = sbr.rel (%p27) target = $region8
    $region5: #{tpu_custom_call.1} parent=1 // loop_body
      %s31 = ssub.s32 %s26, 1
      %s32 = ssub.s32 %s26, 2
      %s39 = sadd.s32 1, %s34
      %p40 = scmp.ge.s32.totalorder %s39, 1
      %s41 = scalar_select %p40, 0, %s39
      %s42 = sadd.s32 1, %s33
      %s43 = scalar_select %p40, %s42, %s33
      %p44 = scmp.ge.s32.totalorder %s43, 2
      %s45 = scalar_select %p44, 0, %s43
      %s47 = sadd.s32 %s46, 1
      %p50 = scmp.eq.s32.totalorder %s26, 1
      %p51 = scmp.ne.s32.totalorder %s46, %s48
      %p52 = scmp.eq.s32.totalorder %s26, 0
      %p53 = por %p51, %p52
      %p54 = scmp.ne.s32.totalorder %s46, %s48
      %p55 = scmp.eq.s32.totalorder %s31, 1
      %p56 = por %p54, %p55
      %p57 = scmp.ne.s32.totalorder %s48, %s49
      %p58 = scmp.eq.s32.totalorder %s31, 0
      %p59 = por %p57, %p58
      %p60 = scmp.ne.s32.totalorder %s48, %s49
      %p61 = scmp.eq.s32.totalorder %s32, 1
      %p62 = por %p60, %p61
      %p64 = scmp.ne.s32.totalorder %s49, %s63
      %p65 = scmp.eq.s32.totalorder %s32, 0
      %p66 = por %p64, %p65
      %s67 = ssub.s32 %s33, %s45
      %s68 = ssub.s32 %s34, %s41
      %s69 = sor.u32 %s67, %s68
      %p70 = scmp.eq.s32.totalorder %s69, 0
      %s72 = sadd.s32 %s71, 1
      %s73 = scalar_select %p70, %s71, %s72
      %p76 = pneg %p70
      %p77 = scmp.eq.s32.totalorder %s26, 1
      %p78 = por %p76, %p77
      %p79 = scmp.ne.s32.totalorder %s71, %s74
      %p80 = scmp.eq.s32.totalorder %s26, 0
      %p81 = por %p79, %p80
      %p82 = scmp.ne.s32.totalorder %s71, %s74
      %p83 = scmp.eq.s32.totalorder %s31, 1
      %p84 = por %p82, %p83
      %p85 = scmp.ne.s32.totalorder %s74, %s75
      %p86 = scmp.eq.s32.totalorder %s31, 0
      %p87 = por %p85, %p86
      %p88 = scmp.ne.s32.totalorder %s74, %s75
      %p89 = scmp.eq.s32.totalorder %s32, 1
      %p90 = por %p88, %p89
      %p92 = scmp.ne.s32.totalorder %s75, %s91
      %p93 = scmp.eq.s32.totalorder %s32, 0
      %p94 = por %p92, %p93
      %s95 = ssub.s32 %s33, %s45
      %p96 = scmp.eq.s32.totalorder %s95, 0
      %s98 = sadd.s32 %s97, 1
      %s99 = scalar_select %p96, %s97, %s98
      %p102 = pneg %p96
      %p103 = scmp.eq.s32.totalorder %s26, 1
      %p104 = por %p102, %p103
      %p105 = scmp.ne.s32.totalorder %s97, %s100
      %p106 = scmp.eq.s32.totalorder %s26, 0
      %p107 = por %p105, %p106
      %p108 = scmp.ne.s32.totalorder %s97, %s100
      %p109 = scmp.eq.s32.totalorder %s31, 1
      %p110 = por %p108, %p109
      %p111 = scmp.ne.s32.totalorder %s100, %s101
      %p112 = scmp.eq.s32.totalorder %s31, 0
      %p113 = por %p111, %p112
      %p114 = scmp.ne.s32.totalorder %s100, %s101
      %p115 = scmp.eq.s32.totalorder %s32, 1
      %p116 = por %p114, %p115
      %p118 = scmp.ne.s32.totalorder %s101, %s117
      %p119 = scmp.eq.s32.totalorder %s32, 0
      %p120 = por %p118, %p119
      %s121 = ssub.s32 %s33, %s45
      %p122 = scmp.eq.s32.totalorder %s121, 0
      %s124 = sadd.s32 %s123, 1
      %s125 = scalar_select %p122, %s123, %s124
      %p128 = pneg %p122
      %p129 = scmp.eq.s32.totalorder %s26, 1
      %p130 = por %p128, %p129
      %p131 = scmp.ne.s32.totalorder %s123, %s126
      %p132 = scmp.eq.s32.totalorder %s26, 0
      %p133 = por %p131, %p132
      %p134 = scmp.ne.s32.totalorder %s123, %s126
      %p135 = scmp.eq.s32.totalorder %s31, 1
      %p136 = por %p134, %p135
      %p137 = scmp.ne.s32.totalorder %s126, %s127
      %p138 = scmp.eq.s32.totalorder %s31, 0
      %p139 = por %p137, %p138
      %p140 = scmp.ne.s32.totalorder %s126, %s127
      %p141 = scmp.eq.s32.totalorder %s32, 1
      %p142 = por %p140, %p141
      %p144 = scmp.ne.s32.totalorder %s127, %s143
      %p145 = scmp.eq.s32.totalorder %s32, 0
      %p146 = por %p144, %p145
      %s148 = sadd.s32 %s147, 1
      %p151 = scmp.eq.s32.totalorder %s26, 1
      %p152 = scmp.ne.s32.totalorder %s147, %s149
      %p153 = scmp.eq.s32.totalorder %s26, 0
      %p154 = por %p152, %p153
      %p155 = scmp.ne.s32.totalorder %s147, %s149
      %p156 = scmp.eq.s32.totalorder %s31, 1
      %p157 = por %p155, %p156
      %p158 = scmp.ne.s32.totalorder %s149, %s150
      %p159 = scmp.eq.s32.totalorder %s31, 0
      %p160 = por %p158, %p159
      %p161 = scmp.ne.s32.totalorder %s149, %s150
      %p162 = scmp.eq.s32.totalorder %s32, 1
      %p163 = por %p161, %p162
      %p165 = scmp.ne.s32.totalorder %s150, %s164
      %p166 = scmp.eq.s32.totalorder %s32, 0
      %p167 = por %p165, %p166
      %s169 = sadd.s32 %s168, 1
      %p172 = scmp.eq.s32.totalorder %s26, 1
      %p173 = scmp.ne.s32.totalorder %s168, %s170
      %p174 = scmp.eq.s32.totalorder %s26, 0
      %p175 = por %p173, %p174
      %p176 = scmp.ne.s32.totalorder %s168, %s170
      %p177 = scmp.eq.s32.totalorder %s31, 1
      %p178 = por %p176, %p177
      %p179 = scmp.ne.s32.totalorder %s170, %s171
      %p180 = scmp.eq.s32.totalorder %s31, 0
      %p181 = por %p179, %p180
      %p182 = scmp.ne.s32.totalorder %s170, %s171
      %p183 = scmp.eq.s32.totalorder %s32, 1
      %p184 = por %p182, %p183
      %p186 = scmp.ne.s32.totalorder %s171, %s185
      %p187 = scmp.eq.s32.totalorder %s32, 0
      %p188 = por %p186, %p187
      %s190 = sadd.s32 %s189, 1
      %p193 = scmp.eq.s32.totalorder %s26, 1
      %p194 = scmp.ne.s32.totalorder %s189, %s191
      %p195 = scmp.eq.s32.totalorder %s26, 0
      %p196 = por %p194, %p195
      %p197 = scmp.ne.s32.totalorder %s189, %s191
      %p198 = scmp.eq.s32.totalorder %s31, 1
      %p199 = por %p197, %p198
      %p200 = scmp.ne.s32.totalorder %s191, %s192
      %p201 = scmp.eq.s32.totalorder %s31, 0
      %p202 = por %p200, %p201
      %p203 = scmp.ne.s32.totalorder %s191, %s192
      %p204 = scmp.eq.s32.totalorder %s32, 1
      %p205 = por %p203, %p204
      %p207 = scmp.ne.s32.totalorder %s192, %s206
      %p208 = scmp.eq.s32.totalorder %s32, 0
      %p209 = por %p207, %p208
      %s211 = sadd.s32 %s210, 1
      %p214 = scmp.eq.s32.totalorder %s26, 1
      %p215 = scmp.ne.s32.totalorder %s210, %s212
      %p216 = scmp.eq.s32.totalorder %s26, 0
      %p217 = por %p215, %p216
      %p218 = scmp.ne.s32.totalorder %s210, %s212
      %p219 = scmp.eq.s32.totalorder %s31, 1
      %p220 = por %p218, %p219
      %p221 = scmp.ne.s32.totalorder %s212, %s213
      %p222 = scmp.eq.s32.totalorder %s31, 0
      %p223 = por %p221, %p222
      %p224 = scmp.ne.s32.totalorder %s212, %s213
      %p225 = scmp.eq.s32.totalorder %s32, 1
      %p226 = por %p224, %p225
      %p228 = scmp.ne.s32.totalorder %s213, %s227
      %p229 = scmp.eq.s32.totalorder %s32, 0
      %p230 = por %p228, %p229
      %s231 = ssub.s32 %s33, %s45
      %s232 = ssub.s32 %s34, %s41
      %s233 = sor.u32 %s231, %s232
      %p234 = scmp.eq.s32.totalorder %s233, 0
      %s236 = sadd.s32 %s235, 1
      %s237 = scalar_select %p234, %s235, %s236
      %p240 = pneg %p234
      %p241 = scmp.eq.s32.totalorder %s26, 1
      %p242 = por %p240, %p241
      %p243 = scmp.ne.s32.totalorder %s235, %s238
      %p244 = scmp.eq.s32.totalorder %s26, 0
      %p245 = por %p243, %p244
      %p246 = scmp.ne.s32.totalorder %s235, %s238
      %p247 = scmp.eq.s32.totalorder %s31, 1
      %p248 = por %p246, %p247
      %p249 = scmp.ne.s32.totalorder %s238, %s239
      %p250 = scmp.eq.s32.totalorder %s31, 0
      %p251 = por %p249, %p250
      %p252 = scmp.ne.s32.totalorder %s238, %s239
      %p253 = scmp.eq.s32.totalorder %s32, 1
      %p254 = por %p252, %p253
      %p256 = scmp.ne.s32.totalorder %s239, %s255
      %p257 = scmp.eq.s32.totalorder %s32, 0
      %p258 = por %p256, %p257
      %p259 = scmp.le.s32.totalorder 1, %s26
      %p260 = scmp.lt.s32.totalorder %s26, 3
      %p261 = pnand %p259, %p260
      %p262 = pneg %p261
      // Predicated region
      $region9: #{tpu_custom_call.1} parent=5 // pred_check
        _
      $region10: #{tpu_custom_call.1} parent=5 // pred_check_branch
        %264 = sbr.rel (%p261) target = $region12
      $region11: #{tpu_custom_call.1} parent=5 // pred_region
        %s265 = ssub.s32 %s26, 1
        // Predicated region
        $region13: #{tpu_custom_call.1} parent=11 // pred_check
          %p266 = pneg %p59
        $region14: #{tpu_custom_call.1} parent=11 // pred_check_branch
          %268 = sbr.rel (%p266) target = $region16
        $region15: #{tpu_custom_call.1} parent=11 // pred_region
          %s270 = ssub.s32 16, 16
          %271 = vsyncadd [#allocation5], %s270
          %274 = dma.hbm_to_smem %s0, 16, [#allocation2], [#allocation5]
        $region16: #{tpu_custom_call.1} parent=11 // pred_fallthru
          _
        // Predicated region
        $region17: #{tpu_custom_call.1} parent=11 // pred_check
          %p275 = pneg %p160
        $region18: #{tpu_custom_call.1} parent=11 // pred_check_branch
          %277 = sbr.rel (%p275) target = $region20
        $region19: #{tpu_custom_call.1} parent=11 // pred_region
          %s279 = ssub.s32 16, 16
          %280 = vsyncadd [#allocation11], %s279
          %s282 = sshll.u32 [#allocation10], 4
          %s283 = int_to_ptr.vmem [resolvable:$true] %s282
          %285 = dma.hbm_to_vmem [thread:$0]  %s4, 16, %s283, [#allocation11]
        $region20: #{tpu_custom_call.1} parent=11 // pred_fallthru
          _
        // Predicated region
        $region21: #{tpu_custom_call.1} parent=11 // pred_check
          %p286 = pneg %p181
        $region22: #{tpu_custom_call.1} parent=11 // pred_check_branch
          %288 = sbr.rel (%p286) target = $region24
        $region23: #{tpu_custom_call.1} parent=11 // pred_region
          %s290 = ssub.s32 16, 16
          %291 = vsyncadd [#allocation11], %s290
          %s293 = sshll.u32 [#allocation12], 4
          %s294 = int_to_ptr.vmem [resolvable:$true] %s293
          %296 = dma.hbm_to_vmem [thread:$0]  %s5, 16, %s294, [#allocation11]
        $region24: #{tpu_custom_call.1} parent=11 // pred_fallthru
          _
        // Predicated region
        $region25: #{tpu_custom_call.1} parent=11 // pred_check
          %p297 = pneg %p202
        $region26: #{tpu_custom_call.1} parent=11 // pred_check_branch
          %299 = sbr.rel (%p297) target = $region28
        $region27: #{tpu_custom_call.1} parent=11 // pred_region
          %s301 = ssub.s32 256, 256
          %302 = vsyncadd [#allocation14], %s301
          %s303 = sshll.u32 [#allocation13], 4
          %s304 = int_to_ptr.vmem [resolvable:$true] %s303
          %309 = dma.hbm_to_vmem [thread:$0]  %s6, 256, %s304, [#allocation14], 64, 64, 4
        $region28: #{tpu_custom_call.1} parent=11 // pred_fallthru
          _
        // Predicated region
        $region29: #{tpu_custom_call.1} parent=11 // pred_check
          %p310 = pneg %p223
        $region30: #{tpu_custom_call.1} parent=11 // pred_check_branch
          %312 = sbr.rel (%p310) target = $region32
        $region31: #{tpu_custom_call.1} parent=11 // pred_region
          %s314 = ssub.s32 256, 256
          %315 = vsyncadd [#allocation14], %s314
          %s316 = sshll.u32 [#allocation15], 4
          %s317 = int_to_ptr.vmem [resolvable:$true] %s316
          %322 = dma.hbm_to_vmem [thread:$0]  %s7, 256, %s317, [#allocation14], 64, 64, 4
        $region32: #{tpu_custom_call.1} parent=11 // pred_fallthru
          _
      $region12: #{tpu_custom_call.1} parent=5 // pred_fallthru
        _
      %p323 = scmp.lt.s32.totalorder %s26, 2
      // Predicated region
      $region33: #{tpu_custom_call.1} parent=5 // pred_check
        %p324 = pneg %p323
      $region34: #{tpu_custom_call.1} parent=5 // pred_check_branch
        %326 = sbr.rel (%p324) target = $region36
      $region35: #{tpu_custom_call.1} parent=5 // pred_region
        // Predicated region
        $region37: #{tpu_custom_call.1} parent=35 // pred_check
          %p327 = pneg %p81
        $region38: #{tpu_custom_call.1} parent=35 // pred_check_branch
          %329 = sbr.rel (%p327) target = $region40
        $region39: #{tpu_custom_call.1} parent=35 // pred_region
          %s330 = sand.u32 %s71, 1
          %s331 = scalar_lea.sflag [#allocation3], %s330
          %s332 = sand.u32 %s71, 1
          %s333 = smul.addr %s332, 8
          %s334 = scalar_lea.vmem [#allocation6], %s333
          %s336 = ssub.s32 128, 128
          %337 = vsyncadd %s331, %s336
          %s338 = sadd.s32 %s34, %s33
          %s339 = smul.addr %s338, 128
          %s340 = scalar_lea.hbm %s1, %s339
          %s342 = sshll.u32 %s334, 4
          %s343 = int_to_ptr.vmem [resolvable:$true] %s342
          %345 = dma.hbm_to_vmem [thread:$0]  %s340, 128, %s343, %s331
        $region40: #{tpu_custom_call.1} parent=35 // pred_fallthru
          _
        // Predicated region
        $region41: #{tpu_custom_call.1} parent=35 // pred_check
          %p346 = pneg %p107
        $region42: #{tpu_custom_call.1} parent=35 // pred_check_branch
          %348 = sbr.rel (%p346) target = $region44
        $region43: #{tpu_custom_call.1} parent=35 // pred_region
          %s349 = sand.u32 %s26, 1
          %s350 = scalar_lea.sflag [#allocation8], %s349
          %s351 = sand.u32 %s97, 1
          %s352 = smul.addr %s351, 16
          %s353 = scalar_lea.vmem [#allocation7], %s352
          %s355 = ssub.s32 256, 256
          %356 = vsyncadd %s350, %s355
          %s357 = smul.addr %s33, 4
          %s358 = smul.addr %s357, 64
          %s359 = scalar_lea.hbm %s2, %s358
          %s360 = sshll.u32 %s353, 4
          %s361 = int_to_ptr.vmem [resolvable:$true] %s360
          %366 = dma.hbm_to_vmem [thread:$0]  %s359, 256, %s361, %s350, 64, 64, 4
        $region44: #{tpu_custom_call.1} parent=35 // pred_fallthru
          _
        // Predicated region
        $region45: #{tpu_custom_call.1} parent=35 // pred_check
          %p367 = pneg %p133
        $region46: #{tpu_custom_call.1} parent=35 // pred_check_branch
          %369 = sbr.rel (%p367) target = $region48
        $region47: #{tpu_custom_call.1} parent=35 // pred_region
          %s370 = sand.u32 %s26, 1
          %s371 = scalar_lea.sflag [#allocation8], %s370
          %s372 = sand.u32 %s123, 1
          %s373 = smul.addr %s372, 16
          %s374 = scalar_lea.vmem [#allocation9], %s373
          %s376 = ssub.s32 256, 256
          %377 = vsyncadd %s371, %s376
          %s378 = smul.addr %s33, 4
          %s379 = smul.addr %s378, 64
          %s380 = scalar_lea.hbm %s3, %s379
          %s381 = sshll.u32 %s374, 4
          %s382 = int_to_ptr.vmem [resolvable:$true] %s381
          %387 = dma.hbm_to_vmem [thread:$0]  %s380, 256, %s382, %s371, 64, 64, 4
        $region48: #{tpu_custom_call.1} parent=35 // pred_fallthru
          _
      $region36: #{tpu_custom_call.1} parent=5 // pred_fallthru
        _
      %p388 = scmp.le.s32.totalorder 1, %s26
      %p389 = scmp.lt.s32.totalorder %s26, 3
      %p390 = pnand %p388, %p389
      %p391 = pneg %p390
      // Predicated region
      $region49: #{tpu_custom_call.1} parent=5 // pred_check
        _
      $region50: #{tpu_custom_call.1} parent=5 // pred_check_branch
        %393 = sbr.rel (%p390) target = $region52
      $region51: #{tpu_custom_call.1} parent=5 // pred_region
        %s394 = ssub.s32 %s26, 1
        // Predicated region
        $region53: #{tpu_custom_call.1} parent=51 // pred_check
          %p395 = pneg %p59
        $region54: #{tpu_custom_call.1} parent=51 // pred_check_branch
          %397 = sbr.rel (%p395) target = $region56
        $region55: #{tpu_custom_call.1} parent=51 // pred_region
          %398 = dma.done [#allocation5], 16
        $region56: #{tpu_custom_call.1} parent=51 // pred_fallthru
          _
        %s399 = sand.u32 %s74, 1
        %s400 = scalar_lea.sflag [#allocation3], %s399
        %s401 = sand.u32 %s74, 1
        %s402 = smul.addr %s401, 8
        %s403 = scalar_lea.vmem [#allocation6], %s402
        // Predicated region
        $region57: #{tpu_custom_call.1} parent=51 // pred_check
          %p404 = pneg %p87
        $region58: #{tpu_custom_call.1} parent=51 // pred_check_branch
          %406 = sbr.rel (%p404) target = $region60
        $region59: #{tpu_custom_call.1} parent=51 // pred_region
          %407 = dma.done %s400, 128
        $region60: #{tpu_custom_call.1} parent=51 // pred_fallthru
          _
        %s408 = sand.u32 %s31, 1
        %s409 = scalar_lea.sflag [#allocation8], %s408
        %s410 = sand.u32 %s100, 1
        %s411 = smul.addr %s410, 16
        %s412 = scalar_lea.vmem [#allocation7], %s411
        // Predicated region
        $region61: #{tpu_custom_call.1} parent=51 // pred_check
          %p413 = pneg %p113
        $region62: #{tpu_custom_call.1} parent=51 // pred_check_branch
          %415 = sbr.rel (%p413) target = $region64
        $region63: #{tpu_custom_call.1} parent=51 // pred_region
          %416 = dma.done %s409, 256
        $region64: #{tpu_custom_call.1} parent=51 // pred_fallthru
          _
        %s417 = sand.u32 %s31, 1
        %s418 = scalar_lea.sflag [#allocation8], %s417
        %s419 = sand.u32 %s126, 1
        %s420 = smul.addr %s419, 16
        %s421 = scalar_lea.vmem [#allocation9], %s420
        // Predicated region
        $region65: #{tpu_custom_call.1} parent=51 // pred_check
          %p422 = pneg %p139
        $region66: #{tpu_custom_call.1} parent=51 // pred_check_branch
          %424 = sbr.rel (%p422) target = $region68
        $region67: #{tpu_custom_call.1} parent=51 // pred_region
          %425 = dma.done %s418, 256
        $region68: #{tpu_custom_call.1} parent=51 // pred_fallthru
          _
        // Predicated region
        $region69: #{tpu_custom_call.1} parent=51 // pred_check
          %p426 = pneg %p160
        $region70: #{tpu_custom_call.1} parent=51 // pred_check_branch
          %428 = sbr.rel (%p426) target = $region72
        $region71: #{tpu_custom_call.1} parent=51 // pred_region
          %429 = dma.done [#allocation11], 16
        $region72: #{tpu_custom_call.1} parent=51 // pred_fallthru
          _
        // Predicated region
        $region73: #{tpu_custom_call.1} parent=51 // pred_check
          %p430 = pneg %p181
        $region74: #{tpu_custom_call.1} parent=51 // pred_check_branch
          %432 = sbr.rel (%p430) target = $region76
        $region75: #{tpu_custom_call.1} parent=51 // pred_region
          %433 = dma.done [#allocation11], 16
        $region76: #{tpu_custom_call.1} parent=51 // pred_fallthru
          _
        // Predicated region
        $region77: #{tpu_custom_call.1} parent=51 // pred_check
          %p434 = pneg %p202
        $region78: #{tpu_custom_call.1} parent=51 // pred_check_branch
          %436 = sbr.rel (%p434) target = $region80
        $region79: #{tpu_custom_call.1} parent=51 // pred_region
          %437 = dma.done [#allocation14], 256
        $region80: #{tpu_custom_call.1} parent=51 // pred_fallthru
          _
        // Predicated region
        $region81: #{tpu_custom_call.1} parent=51 // pred_check
          %p438 = pneg %p223
        $region82: #{tpu_custom_call.1} parent=51 // pred_check_branch
          %440 = sbr.rel (%p438) target = $region84
        $region83: #{tpu_custom_call.1} parent=51 // pred_region
          %441 = dma.done [#allocation14], 256
        $region84: #{tpu_custom_call.1} parent=51 // pred_fallthru
          _
        %442 = sfence
        %p443 = pneg %p59
        %p444 = pneg %p56
        %s445 = sand.u32 %s74, 1
        %s446 = scalar_lea.sflag [#allocation3], %s445
        %s447 = sand.u32 %s74, 1
        %s448 = smul.addr %s447, 8
        %s449 = scalar_lea.vmem [#allocation6], %s448
        %p450 = pneg %p87
        %p451 = pneg %p84
        %s452 = sand.u32 %s31, 1
        %s453 = scalar_lea.sflag [#allocation8], %s452
        %s454 = sand.u32 %s100, 1
        %s455 = smul.addr %s454, 16
        %s456 = scalar_lea.vmem [#allocation7], %s455
        %p457 = pneg %p113
        %p458 = pneg %p110
        %s459 = sand.u32 %s31, 1
        %s460 = scalar_lea.sflag [#allocation8], %s459
        %s461 = sand.u32 %s126, 1
        %s462 = smul.addr %s461, 16
        %s463 = scalar_lea.vmem [#allocation9], %s462
        %p464 = pneg %p139
        %p465 = pneg %p136
        %p466 = pneg %p160
        %p467 = pneg %p157
        %p468 = pneg %p181
        %p469 = pneg %p178
        %p470 = pneg %p202
        %p471 = pneg %p199
        %p472 = pneg %p223
        %p473 = pneg %p220
        %p474 = pneg %p251
        %p475 = pneg %p248
        %s476 = sand.u32 %s238, 1
        %s477 = scalar_lea.sflag [#allocation4], %s476
        %s478 = sand.u32 %s238, 1
        %s479 = smul.addr %s478, 8
        %s480 = scalar_lea.vmem [#allocation16], %s479
        %v482 = vld [vmem:[%s403] sm:$0xff]
        %v483 = vld [vmem:[#allocation10] sm:$0x1]
        %v484 = vld [vmem:[#allocation12] sm:$0x1]
        %vm485 = vcmask 261120
        %v486 = vsel %vm485, %v482, 0.0
        %487 = vadd.xlane.f32.xlu0 %v486
        %v488 = vpop.xlane.xlu0 %487
        %v489 = vrcp.pop 32.0
        %v490 = vmul.f32 %v488, %v489
        %v491 = vsub.f32 %v482, %v490
        %v492 = vmul.f32 %v491, %v491
        %v493 = vsel %vm485, %v492, 0.0
        %494 = vadd.xlane.f32.xlu0 %v493
        %v495 = vpop.xlane.xlu0 %494
        %v496 = vmul.f32 %v495, %v489
        %v497 = vadd.f32 %v496, 1e-05
        %v498 = vrsqrt.pop %v497
        %v499 = vmul.f32 %v491, %v498
        %v501 = vlaneseq
        %v502 = vshrl.u32 %v501, 7
        %v503 = vsub.s32 0, %v502
        %v504 = vrot.slane %v483, %v503
        %v506 = vmul.f32 %v499, %v504
        %v508 = vlaneseq
        %v509 = vshrl.u32 %v508, 7
        %v510 = vsub.s32 0, %v509
        %v511 = vrot.slane %v484, %v510
        %v513 = vadd.f32 %v506, %v511
        %v514 = vpack.c.bf16 %v513, %v513
        %v515 = vld [vmem:[#allocation13] sm:$0xf]
        %v516 = vld [vmem:[#allocation13 + $0x4] sm:$0xf]
        %v517 = vld [vmem:[#allocation13 + $0x8] sm:$0xf]
        %v518 = vld [vmem:[#allocation13 + $0xc] sm:$0xf]
        %v523 = vunpack.c.l.b16 %v515
        %v524 = vunpack.c.l.b16 %v516
        %v525 = vunpack.c.l.b16 %v517
        %v526 = vunpack.c.l.b16 %v518
        %v527 = vpack.c.b16 %v524, %v523
        %v528 = vpack.c.b16 %v526, %v525
        %v532 = vsel %vm485, %v514, 0
        %534 = vmatprep.subr.bf16.mxu0 0
        %535 = vmatpush1.bf16.msra.mxu0 %v527
        %536 = vmatprep.subr.bf16.mxu0 0
        %537 = vmatpush1.bf16.msra.mxu0 %v528
        %538 = vmatprep.subr.bf16.mxu0 0
        %539 = vmatpush1.bf16.msra.mxu0 0
        %540 = vmatprep.subr.bf16.mxu0 0
        %541 = vmatpush1.bf16.msra.mxu0 0
        %542 = vmatprep.subr.bf16.mxu0 0
        %543 = vmatpush1.bf16.msra.mxu0 0
        %544 = vmatprep.subr.bf16.mxu0 0
        %545 = vmatpush1.bf16.msra.mxu0 0
        %546 = vmatprep.subr.bf16.mxu0 0
        %547 = vmatpush1.bf16.msra.mxu0 0
        %548 = vmatprep.subr.bf16.mxu0 0
        %549 = vmatpush1.bf16.msra.mxu0 0
        %550 = vmatprep.subr.bf16.mxu0 0
        %551 = vmatpush1.bf16.msra.mxu0 0
        %552 = vmatprep.subr.bf16.mxu0 0
        %553 = vmatpush1.bf16.msra.mxu0 0
        %554 = vmatprep.subr.bf16.mxu0 0
        %555 = vmatpush1.bf16.msra.mxu0 0
        %556 = vmatprep.subr.bf16.mxu0 0
        %557 = vmatpush1.bf16.msra.mxu0 0
        %558 = vmatprep.subr.bf16.mxu0 0
        %559 = vmatpush1.bf16.msra.mxu0 0
        %560 = vmatprep.subr.bf16.mxu0 0
        %561 = vmatpush1.bf16.msra.mxu0 0
        %562 = vmatprep.subr.bf16.mxu0 0
        %563 = vmatpush1.bf16.msra.mxu0 0
        %564 = vmatprep.subr.bf16.mxu0 0
        %565 = vmatpush1.bf16.msra.mxu0 0
        %566 = vmatprep.mubr.bf16.mxu0 0
        %567 = vmatmul.mubr.bf16.gmra.mrb[0].mxu0 %v532
        %v568 = vpop.f32.mrb[0].mxu0
        %v569 = vadd.f32 0.0, %v568
        %v570 = vpop.f32.mrb[0].mxu0
        %v571 = vpop.f32.mrb[0].mxu0
        %v572 = vpop.f32.mrb[0].mxu0
        %573 = vdwg.mxu0
        %v574 = vpack.c.bf16 %v569, %v569
        %576 = vrot.lane.b32.xlu0 %v574, 120
        %v577 = vpop.permute.xlu0 %576
        %578 = vrot.lane.b32.xlu0 %v574, 112
        %v579 = vpop.permute.xlu0 %578
        %580 = vrot.lane.b32.xlu0 %v574, 104
        %v581 = vpop.permute.xlu0 %580
        %v583 = vunpack.c.l.s4 1983009808
        %v584 = vunpack.c.0.s8 %v583
        %v585 = vlaneseq
        %v586 = vshrl.u32 %v585, 7
        %v587 = vsub.s32 %v584, %v586
        %v588 = vrot.slane %v574, %v587
        %v591 = vunpack.c.l.s4 1983009808
        %v592 = vunpack.c.0.s8 %v591
        %v593 = vlaneseq
        %v594 = vshrl.u32 %v593, 7
        %v595 = vsub.s32 %v592, %v594
        %v596 = vrot.slane %v579, %v595
        %v597 = vcombine.low %v588, %v596
        %v598 = vcombine.high %v588, %v596
        %v600 = vunpack.c.l.s4 1934713408
        %v601 = vunpack.c.0.s8 %v600
        %v602 = vlaneseq
        %v603 = vshrl.u32 %v602, 7
        %v604 = vsub.s32 %v601, %v603
        %v605 = vrot.slane %v597, %v604
        %v607 = vunpack.c.l.s4 1934713408
        %v608 = vunpack.c.0.s8 %v607
        %v609 = vlaneseq
        %v610 = vshrl.u32 %v609, 7
        %v611 = vsub.s32 %v608, %v610
        %v612 = vrot.slane %v598, %v611
        %v613 = vcombine.high %v605, 0
        %v614 = vcombine.high %v612, 0
        %v617 = vunpack.c.l.s4 1983009808
        %v618 = vunpack.c.0.s8 %v617
        %v619 = vlaneseq
        %v620 = vshrl.u32 %v619, 7
        %v621 = vsub.s32 %v618, %v620
        %v622 = vrot.slane %v577, %v621
        %v625 = vunpack.c.l.s4 1983009808
        %v626 = vunpack.c.0.s8 %v625
        %v627 = vlaneseq
        %v628 = vshrl.u32 %v627, 7
        %v629 = vsub.s32 %v626, %v628
        %v630 = vrot.slane %v581, %v629
        %v631 = vcombine.low %v622, %v630
        %v632 = vcombine.high %v622, %v630
        %v634 = vunpack.c.l.s4 1934713408
        %v635 = vunpack.c.0.s8 %v634
        %v636 = vlaneseq
        %v637 = vshrl.u32 %v636, 7
        %v638 = vsub.s32 %v635, %v637
        %v639 = vrot.slane %v631, %v638
        %v641 = vunpack.c.l.s4 1934713408
        %v642 = vunpack.c.0.s8 %v641
        %v643 = vlaneseq
        %v644 = vshrl.u32 %v643, 7
        %v645 = vsub.s32 %v642, %v644
        %v646 = vrot.slane %v632, %v645
        %v647 = vcombine.high %v639, 0
        %v648 = vcombine.high %v646, 0
        %v651 = vpack.i.b16 %v639, %v605
        %v653 = vshrl.u32 %v605, 16
        %v654 = vshrl.u32 %v639, 16
        %v655 = vpack.i.b16 %v654, %v653
        %v659 = vpack.i.b16 %v647, %v613
        %v661 = vshrl.u32 %v613, 16
        %v662 = vshrl.u32 %v647, 16
        %v663 = vpack.i.b16 %v662, %v661
        %v667 = vpack.i.b16 %v646, %v612
        %v669 = vshrl.u32 %v612, 16
        %v670 = vshrl.u32 %v646, 16
        %v671 = vpack.i.b16 %v670, %v669
        %v675 = vpack.i.b16 %v648, %v614
        %v677 = vshrl.u32 %v614, 16
        %v678 = vshrl.u32 %v648, 16
        %v679 = vpack.i.b16 %v678, %v677
        %v681 = vcombine.low %v651, %v667
        %v683 = vunpack.c.l.s4 1983009808
        %v684 = vunpack.c.0.s8 %v683
        %v685 = vlaneseq
        %v686 = vshrl.u32 %v685, 7
        %v687 = vsub.s32 %v684, %v686
        %v688 = vrot.slane %v681, %v687
        %v689 = vcombine.low %v659, %v675
        %v691 = vunpack.c.l.s4 1983009808
        %v692 = vunpack.c.0.s8 %v691
        %v693 = vlaneseq
        %v694 = vshrl.u32 %v693, 7
        %v695 = vsub.s32 %v692, %v694
        %v696 = vrot.slane %v689, %v695
        %v697 = vcombine.low %v688, %v696
        %v699 = vunpack.c.l.s4 1934713408
        %v700 = vunpack.c.0.s8 %v699
        %v701 = vlaneseq
        %v702 = vshrl.u32 %v701, 7
        %v703 = vsub.s32 %v700, %v702
        %v704 = vrot.slane %v697, %v703
        %v705 = vcombine.high %v704, 0
        %v706 = vcombine.low %v655, %v671
        %v708 = vunpack.c.l.s4 1983009808
        %v709 = vunpack.c.0.s8 %v708
        %v710 = vlaneseq
        %v711 = vshrl.u32 %v710, 7
        %v712 = vsub.s32 %v709, %v711
        %v713 = vrot.slane %v706, %v712
        %v714 = vcombine.low %v663, %v679
        %v716 = vunpack.c.l.s4 1983009808
        %v717 = vunpack.c.0.s8 %v716
        %v718 = vlaneseq
        %v719 = vshrl.u32 %v718, 7
        %v720 = vsub.s32 %v717, %v719
        %v721 = vrot.slane %v714, %v720
        %v722 = vcombine.low %v713, %v721
        %v724 = vunpack.c.l.s4 1934713408
        %v725 = vunpack.c.0.s8 %v724
        %v726 = vlaneseq
        %v727 = vshrl.u32 %v726, 7
        %v728 = vsub.s32 %v725, %v727
        %v729 = vrot.slane %v722, %v728
        %v730 = vcombine.high %v729, 0
        %v733 = vpack.i.b16 %v729, %v704
        %v734 = vshrl.u32 %v704, 16
        %v735 = vshrl.u32 %v729, 16
        %v736 = vpack.i.b16 %v735, %v734
        %v739 = vpack.i.b16 %v730, %v705
        %v740 = vshrl.u32 %v705, 16
        %v741 = vshrl.u32 %v730, 16
        %v742 = vpack.i.b16 %v741, %v740
        %v743 = vld [vmem:[%s412] sm:$0xf]
        %v744 = vld [vmem:[%s412 + $0x4] sm:$0xf]
        %v745 = vld [vmem:[%s412 + $0x8] sm:$0xf]
        %v746 = vld [vmem:[%s412 + $0xc] sm:$0xf]
        %v747 = vld [vmem:[%s421] sm:$0xf]
        %v748 = vld [vmem:[%s421 + $0x4] sm:$0xf]
        %v749 = vld [vmem:[%s421 + $0x8] sm:$0xf]
        %v750 = vld [vmem:[%s421 + $0xc] sm:$0xf]
        %vm751 = vcmask 64512
        %v753 = vsel %vm751, %v733, 0
        %vm755 = vcmask 1043456
        %v757 = vsel %vm755, %v743, 0
        %759 = vmatprep.subr.bf16.mxu0 0
        %760 = vmatpush1.bf16.msra.mxu0 %v757
        %761 = vmatprep.subr.bf16.mxu0 0
        %762 = vmatpush1.bf16.msra.mxu0 0
        %763 = vmatprep.subr.bf16.mxu0 0
        %764 = vmatpush1.bf16.msra.mxu0 0
        %765 = vmatprep.subr.bf16.mxu0 0
        %766 = vmatpush1.bf16.msra.mxu0 0
        %767 = vmatprep.subr.bf16.mxu0 0
        %768 = vmatpush1.bf16.msra.mxu0 0
        %769 = vmatprep.subr.bf16.mxu0 0
        %770 = vmatpush1.bf16.msra.mxu0 0
        %771 = vmatprep.subr.bf16.mxu0 0
        %772 = vmatpush1.bf16.msra.mxu0 0
        %773 = vmatprep.subr.bf16.mxu0 0
        %774 = vmatpush1.bf16.msra.mxu0 0
        %775 = vmatprep.subr.bf16.mxu0 0
        %776 = vmatpush1.bf16.msra.mxu0 0
        %777 = vmatprep.subr.bf16.mxu0 0
        %778 = vmatpush1.bf16.msra.mxu0 0
        %779 = vmatprep.subr.bf16.mxu0 0
        %780 = vmatpush1.bf16.msra.mxu0 0
        %781 = vmatprep.subr.bf16.mxu0 0
        %782 = vmatpush1.bf16.msra.mxu0 0
        %783 = vmatprep.subr.bf16.mxu0 0
        %784 = vmatpush1.bf16.msra.mxu0 0
        %785 = vmatprep.subr.bf16.mxu0 0
        %786 = vmatpush1.bf16.msra.mxu0 0
        %787 = vmatprep.subr.bf16.mxu0 0
        %788 = vmatpush1.bf16.msra.mxu0 0
        %789 = vmatprep.subr.bf16.mxu0 0
        %790 = vmatpush1.bf16.msra.mxu0 0
        %791 = vmatprep.mubr.bf16.mxu0 0
        %792 = vmatmul.mubr.bf16.gmra.mrb[0].mxu0 %v753
        %v793 = vpop.f32.mrb[0].mxu0
        %v794 = vadd.f32 0.0, %v793
        %v795 = vpop.f32.mrb[0].mxu0
        %v796 = vpop.f32.mrb[0].mxu0
        %v797 = vpop.f32.mrb[0].mxu0
        %798 = vdwg.mxu0
        %v800 = vsel %vm751, %v736, 0
        %v803 = vsel %vm755, %v744, 0
        %805 = vmatprep.subr.bf16.mxu0 0
        %806 = vmatpush1.bf16.msra.mxu0 %v803
        %807 = vmatprep.subr.bf16.mxu0 0
        %808 = vmatpush1.bf16.msra.mxu0 0
        %809 = vmatprep.subr.bf16.mxu0 0
        %810 = vmatpush1.bf16.msra.mxu0 0
        %811 = vmatprep.subr.bf16.mxu0 0
        %812 = vmatpush1.bf16.msra.mxu0 0
        %813 = vmatprep.subr.bf16.mxu0 0
        %814 = vmatpush1.bf16.msra.mxu0 0
        %815 = vmatprep.subr.bf16.mxu0 0
        %816 = vmatpush1.bf16.msra.mxu0 0
        %817 = vmatprep.subr.bf16.mxu0 0
        %818 = vmatpush1.bf16.msra.mxu0 0
        %819 = vmatprep.subr.bf16.mxu0 0
        %820 = vmatpush1.bf16.msra.mxu0 0
        %821 = vmatprep.subr.bf16.mxu0 0
        %822 = vmatpush1.bf16.msra.mxu0 0
        %823 = vmatprep.subr.bf16.mxu0 0
        %824 = vmatpush1.bf16.msra.mxu0 0
        %825 = vmatprep.subr.bf16.mxu0 0
        %826 = vmatpush1.bf16.msra.mxu0 0
        %827 = vmatprep.subr.bf16.mxu0 0
        %828 = vmatpush1.bf16.msra.mxu0 0
        %829 = vmatprep.subr.bf16.mxu0 0
        %830 = vmatpush1.bf16.msra.mxu0 0
        %831 = vmatprep.subr.bf16.mxu0 0
        %832 = vmatpush1.bf16.msra.mxu0 0
        %833 = vmatprep.subr.bf16.mxu0 0
        %834 = vmatpush1.bf16.msra.mxu0 0
        %835 = vmatprep.subr.bf16.mxu0 0
        %836 = vmatpush1.bf16.msra.mxu0 0
        %837 = vmatprep.mubr.bf16.mxu0 0
        %838 = vmatmul.mubr.bf16.gmra.mrb[0].mxu0 %v800
        %v839 = vpop.f32.mrb[0].mxu0
        %v840 = vadd.f32 0.0, %v839
        %v841 = vpop.f32.mrb[0].mxu0
        %v842 = vpop.f32.mrb[0].mxu0
        %v843 = vpop.f32.mrb[0].mxu0
        %844 = vdwg.mxu0
        %v846 = vsel %vm751, %v739, 0
        %v849 = vsel %vm755, %v745, 0
        %851 = vmatprep.subr.bf16.mxu0 0
        %852 = vmatpush1.bf16.msra.mxu0 %v849
        %853 = vmatprep.subr.bf16.mxu0 0
        %854 = vmatpush1.bf16.msra.mxu0 0
        %855 = vmatprep.subr.bf16.mxu0 0
        %856 = vmatpush1.bf16.msra.mxu0 0
        %857 = vmatprep.subr.bf16.mxu0 0
        %858 = vmatpush1.bf16.msra.mxu0 0
        %859 = vmatprep.subr.bf16.mxu0 0
        %860 = vmatpush1.bf16.msra.mxu0 0
        %861 = vmatprep.subr.bf16.mxu0 0
        %862 = vmatpush1.bf16.msra.mxu0 0
        %863 = vmatprep.subr.bf16.mxu0 0
        %864 = vmatpush1.bf16.msra.mxu0 0
        %865 = vmatprep.subr.bf16.mxu0 0
        %866 = vmatpush1.bf16.msra.mxu0 0
        %867 = vmatprep.subr.bf16.mxu0 0
        %868 = vmatpush1.bf16.msra.mxu0 0
        %869 = vmatprep.subr.bf16.mxu0 0
        %870 = vmatpush1.bf16.msra.mxu0 0
        %871 = vmatprep.subr.bf16.mxu0 0
        %872 = vmatpush1.bf16.msra.mxu0 0
        %873 = vmatprep.subr.bf16.mxu0 0
        %874 = vmatpush1.bf16.msra.mxu0 0
        %875 = vmatprep.subr.bf16.mxu0 0
        %876 = vmatpush1.bf16.msra.mxu0 0
        %877 = vmatprep.subr.bf16.mxu0 0
        %878 = vmatpush1.bf16.msra.mxu0 0
        %879 = vmatprep.subr.bf16.mxu0 0
        %880 = vmatpush1.bf16.msra.mxu0 0
        %881 = vmatprep.subr.bf16.mxu0 0
        %882 = vmatpush1.bf16.msra.mxu0 0
        %883 = vmatprep.mubr.bf16.mxu0 0
        %884 = vmatmul.mubr.bf16.gmra.mrb[0].mxu0 %v846
        %v885 = vpop.f32.mrb[0].mxu0
        %v886 = vadd.f32 0.0, %v885
        %v887 = vpop.f32.mrb[0].mxu0
        %v888 = vpop.f32.mrb[0].mxu0
        %v889 = vpop.f32.mrb[0].mxu0
        %890 = vdwg.mxu0
        %v892 = vsel %vm751, %v742, 0
        %v895 = vsel %vm755, %v746, 0
        %897 = vmatprep.subr.bf16.mxu0 0
        %898 = vmatpush1.bf16.msra.mxu0 %v895
        %899 = vmatprep.subr.bf16.mxu0 0
        %900 = vmatpush1.bf16.msra.mxu0 0
        %901 = vmatprep.subr.bf16.mxu0 0
        %902 = vmatpush1.bf16.msra.mxu0 0
        %903 = vmatprep.subr.bf16.mxu0 0
        %904 = vmatpush1.bf16.msra.mxu0 0
        %905 = vmatprep.subr.bf16.mxu0 0
        %906 = vmatpush1.bf16.msra.mxu0 0
        %907 = vmatprep.subr.bf16.mxu0 0
        %908 = vmatpush1.bf16.msra.mxu0 0
        %909 = vmatprep.subr.bf16.mxu0 0
        %910 = vmatpush1.bf16.msra.mxu0 0
        %911 = vmatprep.subr.bf16.mxu0 0
        %912 = vmatpush1.bf16.msra.mxu0 0
        %913 = vmatprep.subr.bf16.mxu0 0
        %914 = vmatpush1.bf16.msra.mxu0 0
        %915 = vmatprep.subr.bf16.mxu0 0
        %916 = vmatpush1.bf16.msra.mxu0 0
        %917 = vmatprep.subr.bf16.mxu0 0
        %918 = vmatpush1.bf16.msra.mxu0 0
        %919 = vmatprep.subr.bf16.mxu0 0
        %920 = vmatpush1.bf16.msra.mxu0 0
        %921 = vmatprep.subr.bf16.mxu0 0
        %922 = vmatpush1.bf16.msra.mxu0 0
        %923 = vmatprep.subr.bf16.mxu0 0
        %924 = vmatpush1.bf16.msra.mxu0 0
        %925 = vmatprep.subr.bf16.mxu0 0
        %926 = vmatpush1.bf16.msra.mxu0 0
        %927 = vmatprep.subr.bf16.mxu0 0
        %928 = vmatpush1.bf16.msra.mxu0 0
        %929 = vmatprep.mubr.bf16.mxu0 0
        %930 = vmatmul.mubr.bf16.gmra.mrb[0].mxu0 %v892
        %v931 = vpop.f32.mrb[0].mxu0
        %v932 = vadd.f32 0.0, %v931
        %v933 = vpop.f32.mrb[0].mxu0
        %v934 = vpop.f32.mrb[0].mxu0
        %v935 = vpop.f32.mrb[0].mxu0
        %936 = vdwg.mxu0
        %v937 = vsel %vm751, %v794, -inf
        %938 = vmax.xlane.f32.xlu0 %v937
        %v939 = vpop.xlane.xlu0 %938
        %v940 = vsel %vm751, %v840, -inf
        %941 = vmax.xlane.f32.xlu0 %v940
        %v942 = vpop.xlane.xlu0 %941
        %v943 = vsel %vm751, %v886, -inf
        %944 = vmax.xlane.f32.xlu0 %v943
        %v945 = vpop.xlane.xlu0 %944
        %v946 = vsel %vm751, %v932, -inf
        %947 = vmax.xlane.f32.xlu0 %v946
        %v948 = vpop.xlane.xlu0 %947
        %v949 = vsub.f32 %v794, %v939
        %v950 = vsub.f32 %v840, %v942
        %v951 = vsub.f32 %v886, %v945
        %v952 = vsub.f32 %v932, %v948
        %v953 = vmul.f32 %v949, 1.442695
        %v954 = vpow.pop %v953
        %v955 = vmul.f32 %v950, 1.442695
        %v956 = vpow.pop %v955
        %v957 = vmul.f32 %v951, 1.442695
        %v958 = vpow.pop %v957
        %v959 = vmul.f32 %v952, 1.442695
        %v960 = vpow.pop %v959
        %v961 = vsel %vm751, %v954, 0.0
        %962 = vadd.xlane.f32.xlu0 %v961
        %v963 = vpop.xlane.xlu0 %962
        %v964 = vsel %vm751, %v956, 0.0
        %965 = vadd.xlane.f32.xlu0 %v964
        %v966 = vpop.xlane.xlu0 %965
        %v967 = vsel %vm751, %v958, 0.0
        %968 = vadd.xlane.f32.xlu0 %v967
        %v969 = vpop.xlane.xlu0 %968
        %v970 = vsel %vm751, %v960, 0.0
        %971 = vadd.xlane.f32.xlu0 %v970
        %v972 = vpop.xlane.xlu0 %971
        %v973 = vrcp.pop %v963
        %v974 = vrcp.pop %v966
        %v975 = vrcp.pop %v969
        %v976 = vrcp.pop %v972
        %v977 = vmul.f32 %v973, 0.35355338
        %v978 = vmul.f32 %v974, 0.35355338
        %v979 = vmul.f32 %v975, 0.35355338
        %v980 = vmul.f32 %v976, 0.35355338
        %v981 = vmul.f32 %v954, %v977
        %v982 = vmul.f32 %v956, %v978
        %v983 = vmul.f32 %v958, %v979
        %v984 = vmul.f32 %v960, %v980
        %v985 = vpack.c.bf16 %v981, %v981
        %v986 = vpack.c.bf16 %v982, %v982
        %v987 = vpack.c.bf16 %v983, %v983
        %v988 = vpack.c.bf16 %v984, %v984
        %v990 = vsel %vm751, %v985, 0
        %v993 = vsel %vm751, %v747, 0
        %995 = vmatprep.subr.bf16.mxu0 0
        %996 = vmatpush1.bf16.xpose.msra.mxu0 %v993
        %997 = vmatprep.subr.bf16.mxu0 0
        %998 = vmatpush1.bf16.xpose.msra.mxu0 0
        %999 = vmatprep.subr.bf16.mxu0 0
        %1000 = vmatpush1.bf16.xpose.msra.mxu0 0
        %1001 = vmatprep.subr.bf16.mxu0 0
        %1002 = vmatpush1.bf16.xpose.msra.mxu0 0
        %1003 = vmatprep.subr.bf16.mxu0 0
        %1004 = vmatpush1.bf16.xpose.msra.mxu0 0
        %1005 = vmatprep.subr.bf16.mxu0 0
        %1006 = vmatpush1.bf16.xpose.msra.mxu0 0
        %1007 = vmatprep.subr.bf16.mxu0 0
        %1008 = vmatpush1.bf16.xpose.msra.mxu0 0
        %1009 = vmatprep.subr.bf16.mxu0 0
        %1010 = vmatpush1.bf16.xpose.msra.mxu0 0
        %1011 = vmatprep.subr.bf16.mxu0 0
        %1012 = vmatpush1.bf16.xpose.msra.mxu0 0
        %1013 = vmatprep.subr.bf16.mxu0 0
        %1014 = vmatpush1.bf16.xpose.msra.mxu0 0
        %1015 = vmatprep.subr.bf16.mxu0 0
        %1016 = vmatpush1.bf16.xpose.msra.mxu0 0
        %1017 = vmatprep.subr.bf16.mxu0 0
        %1018 = vmatpush1.bf16.xpose.msra.mxu0 0
        %1019 = vmatprep.subr.bf16.mxu0 0
        %1020 = vmatpush1.bf16.xpose.msra.mxu0 0
        %1021 = vmatprep.subr.bf16.mxu0 0
        %1022 = vmatpush1.bf16.xpose.msra.mxu0 0
        %1023 = vmatprep.subr.bf16.mxu0 0
        %1024 = vmatpush1.bf16.xpose.msra.mxu0 0
        %1025 = vmatprep.subr.bf16.mxu0 0
        %1026 = vmatpush1.bf16.xpose.msra.mxu0 0
        %1027 = vmatprep.mubr.bf16.mxu0 0
        %1028 = vmatmul.mubr.bf16.gmra.mrb[0].mxu0 %v990
        %v1029 = vpop.f32.mrb[0].mxu0
        %v1030 = vadd.f32 0.0, %v1029
        %v1031 = vpop.f32.mrb[0].mxu0
        %v1032 = vpop.f32.mrb[0].mxu0
        %v1033 = vpop.f32.mrb[0].mxu0
        %1034 = vdwg.mxu0
        %v1036 = vsel %vm751, %v986, 0
        %v1039 = vsel %vm751, %v748, 0
        %1041 = vmatprep.subr.bf16.mxu0 0
        %1042 = vmatpush1.bf16.xpose.msra.mxu0 %v1039
        %1043 = vmatprep.subr.bf16.mxu0 0
        %1044 = vmatpush1.bf16.xpose.msra.mxu0 0
        %1045 = vmatprep.subr.bf16.mxu0 0
        %1046 = vmatpush1.bf16.xpose.msra.mxu0 0
        %1047 = vmatprep.subr.bf16.mxu0 0
        %1048 = vmatpush1.bf16.xpose.msra.mxu0 0
        %1049 = vmatprep.subr.bf16.mxu0 0
        %1050 = vmatpush1.bf16.xpose.msra.mxu0 0
        %1051 = vmatprep.subr.bf16.mxu0 0
        %1052 = vmatpush1.bf16.xpose.msra.mxu0 0
        %1053 = vmatprep.subr.bf16.mxu0 0
        %1054 = vmatpush1.bf16.xpose.msra.mxu0 0
        %1055 = vmatprep.subr.bf16.mxu0 0
        %1056 = vmatpush1.bf16.xpose.msra.mxu0 0
        %1057 = vmatprep.subr.bf16.mxu0 0
        %1058 = vmatpush1.bf16.xpose.msra.mxu0 0
        %1059 = vmatprep.subr.bf16.mxu0 0
        %1060 = vmatpush1.bf16.xpose.msra.mxu0 0
        %1061 = vmatprep.subr.bf16.mxu0 0
        %1062 = vmatpush1.bf16.xpose.msra.mxu0 0
        %1063 = vmatprep.subr.bf16.mxu0 0
        %1064 = vmatpush1.bf16.xpose.msra.mxu0 0
        %1065 = vmatprep.subr.bf16.mxu0 0
        %1066 = vmatpush1.bf16.xpose.msra.mxu0 0
        %1067 = vmatprep.subr.bf16.mxu0 0
        %1068 = vmatpush1.bf16.xpose.msra.mxu0 0
        %1069 = vmatprep.subr.bf16.mxu0 0
        %1070 = vmatpush1.bf16.xpose.msra.mxu0 0
        %1071 = vmatprep.subr.bf16.mxu0 0
        %1072 = vmatpush1.bf16.xpose.msra.mxu0 0
        %1073 = vmatprep.mubr.bf16.mxu0 0
        %1074 = vmatmul.mubr.bf16.gmra.mrb[0].mxu0 %v1036
        %v1075 = vpop.f32.mrb[0].mxu0
        %v1076 = vadd.f32 0.0, %v1075
        %v1077 = vpop.f32.mrb[0].mxu0
        %v1078 = vpop.f32.mrb[0].mxu0
        %v1079 = vpop.f32.mrb[0].mxu0
        %1080 = vdwg.mxu0
        %v1082 = vsel %vm751, %v987, 0
        %v1085 = vsel %vm751, %v749, 0
        %1087 = vmatprep.subr.bf16.mxu0 0
        %1088 = vmatpush1.bf16.xpose.msra.mxu0 %v1085
        %1089 = vmatprep.subr.bf16.mxu0 0
        %1090 = vmatpush1.bf16.xpose.msra.mxu0 0
        %1091 = vmatprep.subr.bf16.mxu0 0
        %1092 = vmatpush1.bf16.xpose.msra.mxu0 0
        %1093 = vmatprep.subr.bf16.mxu0 0
        %1094 = vmatpush1.bf16.xpose.msra.mxu0 0
        %1095 = vmatprep.subr.bf16.mxu0 0
        %1096 = vmatpush1.bf16.xpose.msra.mxu0 0
        %1097 = vmatprep.subr.bf16.mxu0 0
        %1098 = vmatpush1.bf16.xpose.msra.mxu0 0
        %1099 = vmatprep.subr.bf16.mxu0 0
        %1100 = vmatpush1.bf16.xpose.msra.mxu0 0
        %1101 = vmatprep.subr.bf16.mxu0 0
        %1102 = vmatpush1.bf16.xpose.msra.mxu0 0
        %1103 = vmatprep.subr.bf16.mxu0 0
        %1104 = vmatpush1.bf16.xpose.msra.mxu0 0
        %1105 = vmatprep.subr.bf16.mxu0 0
        %1106 = vmatpush1.bf16.xpose.msra.mxu0 0
        %1107 = vmatprep.subr.bf16.mxu0 0
        %1108 = vmatpush1.bf16.xpose.msra.mxu0 0
        %1109 = vmatprep.subr.bf16.mxu0 0
        %1110 = vmatpush1.bf16.xpose.msra.mxu0 0
        %1111 = vmatprep.subr.bf16.mxu0 0
        %1112 = vmatpush1.bf16.xpose.msra.mxu0 0
        %1113 = vmatprep.subr.bf16.mxu0 0
        %1114 = vmatpush1.bf16.xpose.msra.mxu0 0
        %1115 = vmatprep.subr.bf16.mxu0 0
        %1116 = vmatpush1.bf16.xpose.msra.mxu0 0
        %1117 = vmatprep.subr.bf16.mxu0 0
        %1118 = vmatpush1.bf16.xpose.msra.mxu0 0
        %1119 = vmatprep.mubr.bf16.mxu0 0
        %1120 = vmatmul.mubr.bf16.gmra.mrb[0].mxu0 %v1082
        %v1121 = vpop.f32.mrb[0].mxu0
        %v1122 = vadd.f32 0.0, %v1121
        %v1123 = vpop.f32.mrb[0].mxu0
        %v1124 = vpop.f32.mrb[0].mxu0
        %v1125 = vpop.f32.mrb[0].mxu0
        %1126 = vdwg.mxu0
        %v1128 = vsel %vm751, %v988, 0
        %v1131 = vsel %vm751, %v750, 0
        %1133 = vmatprep.subr.bf16.mxu0 0
        %1134 = vmatpush1.bf16.xpose.msra.mxu0 %v1131
        %1135 = vmatprep.subr.bf16.mxu0 0
        %1136 = vmatpush1.bf16.xpose.msra.mxu0 0
        %1137 = vmatprep.subr.bf16.mxu0 0
        %1138 = vmatpush1.bf16.xpose.msra.mxu0 0
        %1139 = vmatprep.subr.bf16.mxu0 0
        %1140 = vmatpush1.bf16.xpose.msra.mxu0 0
        %1141 = vmatprep.subr.bf16.mxu0 0
        %1142 = vmatpush1.bf16.xpose.msra.mxu0 0
        %1143 = vmatprep.subr.bf16.mxu0 0
        %1144 = vmatpush1.bf16.xpose.msra.mxu0 0
        %1145 = vmatprep.subr.bf16.mxu0 0
        %1146 = vmatpush1.bf16.xpose.msra.mxu0 0
        %1147 = vmatprep.subr.bf16.mxu0 0
        %1148 = vmatpush1.bf16.xpose.msra.mxu0 0
        %1149 = vmatprep.subr.bf16.mxu0 0
        %1150 = vmatpush1.bf16.xpose.msra.mxu0 0
        %1151 = vmatprep.subr.bf16.mxu0 0
        %1152 = vmatpush1.bf16.xpose.msra.mxu0 0
        %1153 = vmatprep.subr.bf16.mxu0 0
        %1154 = vmatpush1.bf16.xpose.msra.mxu0 0
        %1155 = vmatprep.subr.bf16.mxu0 0
        %1156 = vmatpush1.bf16.xpose.msra.mxu0 0
        %1157 = vmatprep.subr.bf16.mxu0 0
        %1158 = vmatpush1.bf16.xpose.msra.mxu0 0
        %1159 = vmatprep.subr.bf16.mxu0 0
        %1160 = vmatpush1.bf16.xpose.msra.mxu0 0
        %1161 = vmatprep.subr.bf16.mxu0 0
        %1162 = vmatpush1.bf16.xpose.msra.mxu0 0
        %1163 = vmatprep.subr.bf16.mxu0 0
        %1164 = vmatpush1.bf16.xpose.msra.mxu0 0
        %1165 = vmatprep.mubr.bf16.mxu0 0
        %1166 = vmatmul.mubr.bf16.gmra.mrb[0].mxu0 %v1128
        %v1167 = vpop.f32.mrb[0].mxu0
        %v1168 = vadd.f32 0.0, %v1167
        %v1169 = vpop.f32.mrb[0].mxu0
        %v1170 = vpop.f32.mrb[0].mxu0
        %v1171 = vpop.f32.mrb[0].mxu0
        %1172 = vdwg.mxu0
        %v1173 = vpack.c.bf16 %v1030, %v1030
        %v1175 = vunpack.c.l.s4 1983009808
        %v1176 = vunpack.c.0.s8 %v1175
        %v1177 = vlaneseq
        %v1178 = vshrl.u32 %v1177, 7
        %v1179 = vsub.s32 %v1176, %v1178
        %v1180 = vrot.slane %v1173, %v1179
        %v1181 = vpack.c.bf16 %v1122, %v1122
        %v1183 = vunpack.c.l.s4 1983009808
        %v1184 = vunpack.c.0.s8 %v1183
        %v1185 = vlaneseq
        %v1186 = vshrl.u32 %v1185, 7
        %v1187 = vsub.s32 %v1184, %v1186
        %v1188 = vrot.slane %v1181, %v1187
        %v1189 = vcombine.low %v1180, %v1188
        %v1190 = vcombine.high %v1180, %v1188
        %v1192 = vunpack.c.l.s4 1934713408
        %v1193 = vunpack.c.0.s8 %v1192
        %v1194 = vlaneseq
        %v1195 = vshrl.u32 %v1194, 7
        %v1196 = vsub.s32 %v1193, %v1195
        %v1197 = vrot.slane %v1189, %v1196
        %v1199 = vunpack.c.l.s4 1934713408
        %v1200 = vunpack.c.0.s8 %v1199
        %v1201 = vlaneseq
        %v1202 = vshrl.u32 %v1201, 7
        %v1203 = vsub.s32 %v1200, %v1202
        %v1204 = vrot.slane %v1190, %v1203
        %v1205 = vcombine.high %v1197, 0
        %v1206 = vcombine.high %v1204, 0
        %v1207 = vpack.c.bf16 %v1076, %v1076
        %v1209 = vunpack.c.l.s4 1983009808
        %v1210 = vunpack.c.0.s8 %v1209
        %v1211 = vlaneseq
        %v1212 = vshrl.u32 %v1211, 7
        %v1213 = vsub.s32 %v1210, %v1212
        %v1214 = vrot.slane %v1207, %v1213
        %v1215 = vpack.c.bf16 %v1168, %v1168
        %v1217 = vunpack.c.l.s4 1983009808
        %v1218 = vunpack.c.0.s8 %v1217
        %v1219 = vlaneseq
        %v1220 = vshrl.u32 %v1219, 7
        %v1221 = vsub.s32 %v1218, %v1220
        %v1222 = vrot.slane %v1215, %v1221
        %v1223 = vcombine.low %v1214, %v1222
        %v1224 = vcombine.high %v1214, %v1222
        %v1226 = vunpack.c.l.s4 1934713408
        %v1227 = vunpack.c.0.s8 %v1226
        %v1228 = vlaneseq
        %v1229 = vshrl.u32 %v1228, 7
        %v1230 = vsub.s32 %v1227, %v1229
        %v1231 = vrot.slane %v1223, %v1230
        %v1233 = vunpack.c.l.s4 1934713408
        %v1234 = vunpack.c.0.s8 %v1233
        %v1235 = vlaneseq
        %v1236 = vshrl.u32 %v1235, 7
        %v1237 = vsub.s32 %v1234, %v1236
        %v1238 = vrot.slane %v1224, %v1237
        %v1239 = vcombine.high %v1231, 0
        %v1240 = vcombine.high %v1238, 0
        %v1243 = vpack.i.b16 %v1231, %v1197
        %v1245 = vshrl.u32 %v1197, 16
        %v1246 = vshrl.u32 %v1231, 16
        %v1247 = vpack.i.b16 %v1246, %v1245
        %v1251 = vpack.i.b16 %v1239, %v1205
        %v1253 = vshrl.u32 %v1205, 16
        %v1254 = vshrl.u32 %v1239, 16
        %v1255 = vpack.i.b16 %v1254, %v1253
        %v1259 = vpack.i.b16 %v1238, %v1204
        %v1261 = vshrl.u32 %v1204, 16
        %v1262 = vshrl.u32 %v1238, 16
        %v1263 = vpack.i.b16 %v1262, %v1261
        %v1267 = vpack.i.b16 %v1240, %v1206
        %v1269 = vshrl.u32 %v1206, 16
        %v1270 = vshrl.u32 %v1240, 16
        %v1271 = vpack.i.b16 %v1270, %v1269
        %v1273 = vcombine.low %v1243, %v1259
        %v1275 = vunpack.c.l.s4 1983009808
        %v1276 = vunpack.c.0.s8 %v1275
        %v1277 = vlaneseq
        %v1278 = vshrl.u32 %v1277, 7
        %v1279 = vsub.s32 %v1276, %v1278
        %v1280 = vrot.slane %v1273, %v1279
        %v1281 = vcombine.low %v1251, %v1267
        %v1283 = vunpack.c.l.s4 1983009808
        %v1284 = vunpack.c.0.s8 %v1283
        %v1285 = vlaneseq
        %v1286 = vshrl.u32 %v1285, 7
        %v1287 = vsub.s32 %v1284, %v1286
        %v1288 = vrot.slane %v1281, %v1287
        %v1289 = vcombine.low %v1280, %v1288
        %v1291 = vunpack.c.l.s4 1934713408
        %v1292 = vunpack.c.0.s8 %v1291
        %v1293 = vlaneseq
        %v1294 = vshrl.u32 %v1293, 7
        %v1295 = vsub.s32 %v1292, %v1294
        %v1296 = vrot.slane %v1289, %v1295
        %v1297 = vcombine.high %v1296, 0
        %v1298 = vcombine.low %v1247, %v1263
        %v1300 = vunpack.c.l.s4 1983009808
        %v1301 = vunpack.c.0.s8 %v1300
        %v1302 = vlaneseq
        %v1303 = vshrl.u32 %v1302, 7
        %v1304 = vsub.s32 %v1301, %v1303
        %v1305 = vrot.slane %v1298, %v1304
        %v1306 = vcombine.low %v1255, %v1271
        %v1308 = vunpack.c.l.s4 1983009808
        %v1309 = vunpack.c.0.s8 %v1308
        %v1310 = vlaneseq
        %v1311 = vshrl.u32 %v1310, 7
        %v1312 = vsub.s32 %v1309, %v1311
        %v1313 = vrot.slane %v1306, %v1312
        %v1314 = vcombine.low %v1305, %v1313
        %v1316 = vunpack.c.l.s4 1934713408
        %v1317 = vunpack.c.0.s8 %v1316
        %v1318 = vlaneseq
        %v1319 = vshrl.u32 %v1318, 7
        %v1320 = vsub.s32 %v1317, %v1319
        %v1321 = vrot.slane %v1314, %v1320
        %v1322 = vcombine.high %v1321, 0
        %v1325 = vpack.i.b16 %v1321, %v1296
        %v1326 = vshrl.u32 %v1296, 16
        %v1327 = vshrl.u32 %v1321, 16
        %v1328 = vpack.i.b16 %v1327, %v1326
        %v1331 = vpack.i.b16 %v1322, %v1297
        %v1332 = vshrl.u32 %v1297, 16
        %v1333 = vshrl.u32 %v1322, 16
        %v1334 = vpack.i.b16 %v1333, %v1332
        %1335 = vrot.lane.b32.xlu0 %v1328, 8
        %v1336 = vpop.permute.xlu0 %1335
        %1337 = vrot.lane.b32.xlu0 %v1331, 16
        %v1338 = vpop.permute.xlu0 %1337
        %1339 = vrot.lane.b32.xlu0 %v1334, 24
        %v1340 = vpop.permute.xlu0 %1339
        %v1343 = vsel %vm751, %v1325, %v1336
        %vm1344 = vcmask 130048
        %v1346 = vsel %vm1344, %v1343, %v1338
        %vm1347 = vcmask 195584
        %v1349 = vsel %vm1347, %v1346, %v1340
        %v1350 = vld [vmem:[#allocation15] sm:$0xf]
        %v1351 = vld [vmem:[#allocation15 + $0x4] sm:$0xf]
        %v1352 = vld [vmem:[#allocation15 + $0x8] sm:$0xf]
        %v1353 = vld [vmem:[#allocation15 + $0xc] sm:$0xf]
        %v1358 = vunpack.c.l.b16 %v1350
        %v1359 = vunpack.c.l.b16 %v1351
        %v1360 = vunpack.c.l.b16 %v1352
        %v1361 = vunpack.c.l.b16 %v1353
        %v1362 = vpack.c.b16 %v1359, %v1358
        %v1363 = vpack.c.b16 %v1361, %v1360
        %v1366 = vsel %vm485, %v1349, 0
        %1368 = vmatprep.subr.bf16.mxu0 0
        %1369 = vmatpush1.bf16.msra.mxu0 %v1362
        %1370 = vmatprep.subr.bf16.mxu0 0
        %1371 = vmatpush1.bf16.msra.mxu0 %v1363
        %1372 = vmatprep.subr.bf16.mxu0 0
        %1373 = vmatpush1.bf16.msra.mxu0 0
        %1374 = vmatprep.subr.bf16.mxu0 0
        %1375 = vmatpush1.bf16.msra.mxu0 0
        %1376 = vmatprep.subr.bf16.mxu0 0
        %1377 = vmatpush1.bf16.msra.mxu0 0
        %1378 = vmatprep.subr.bf16.mxu0 0
        %1379 = vmatpush1.bf16.msra.mxu0 0
        %1380 = vmatprep.subr.bf16.mxu0 0
        %1381 = vmatpush1.bf16.msra.mxu0 0
        %1382 = vmatprep.subr.bf16.mxu0 0
        %1383 = vmatpush1.bf16.msra.mxu0 0
        %1384 = vmatprep.subr.bf16.mxu0 0
        %1385 = vmatpush1.bf16.msra.mxu0 0
        %1386 = vmatprep.subr.bf16.mxu0 0
        %1387 = vmatpush1.bf16.msra.mxu0 0
        %1388 = vmatprep.subr.bf16.mxu0 0
        %1389 = vmatpush1.bf16.msra.mxu0 0
        %1390 = vmatprep.subr.bf16.mxu0 0
        %1391 = vmatpush1.bf16.msra.mxu0 0
        %1392 = vmatprep.subr.bf16.mxu0 0
        %1393 = vmatpush1.bf16.msra.mxu0 0
        %1394 = vmatprep.subr.bf16.mxu0 0
        %1395 = vmatpush1.bf16.msra.mxu0 0
        %1396 = vmatprep.subr.bf16.mxu0 0
        %1397 = vmatpush1.bf16.msra.mxu0 0
        %1398 = vmatprep.subr.bf16.mxu0 0
        %1399 = vmatpush1.bf16.msra.mxu0 0
        %1400 = vmatprep.mubr.bf16.mxu0 0
        %1401 = vmatmul.mubr.bf16.gmra.mrb[0].mxu0 %v1366
        %v1402 = vpop.f32.mrb[0].mxu0
        %v1403 = vadd.f32 0.0, %v1402
        %v1404 = vpop.f32.mrb[0].mxu0
        %v1405 = vpop.f32.mrb[0].mxu0
        %v1406 = vpop.f32.mrb[0].mxu0
        %1407 = vdwg.mxu0
        %s1408 = sld [smem:[#allocation2]]
        %v1409 = vstv %s1408
        %v1410 = vmul.f32 %v1409, %v1403
        %v1411 = vadd.f32 %v482, %v1410
        %1412 = vst.msk [vmem:[%s480] sm:$0xff] %vm485, %v1411
        %s1413 = sand.u32 %s238, 1
        %s1414 = scalar_lea.sflag [#allocation4], %s1413
        %s1415 = sand.u32 %s238, 1
        %s1416 = smul.addr %s1415, 8
        %s1417 = scalar_lea.vmem [#allocation16], %s1416
        // Predicated region
        $region85: #{tpu_custom_call.1} parent=51 // pred_check
          %p1418 = pneg %p248
        $region86: #{tpu_custom_call.1} parent=51 // pred_check_branch
          %1420 = sbr.rel (%p1418) target = $region88
        $region87: #{tpu_custom_call.1} parent=51 // pred_region
          %s1422 = ssub.s32 128, 128
          %1423 = vsyncadd %s1414, %s1422
          %s1424 = sadd.s32 %s36, %s35
          %s1425 = smul.addr %s1424, 128
          %s1426 = scalar_lea.hbm %s8, %s1425
          %s1428 = sshll.u32 %s1417, 4
          %s1429 = int_to_ptr.vmem [resolvable:$true] %s1428
          %1431 = dma.vmem_to_hbm [thread:$0]  %s1429, 128, %s1426, %s1414
        $region88: #{tpu_custom_call.1} parent=51 // pred_fallthru
          _
      $region52: #{tpu_custom_call.1} parent=5 // pred_fallthru
        _
      %p1432 = scmp.le.s32.totalorder 2, %s26
      // Predicated region
      $region89: #{tpu_custom_call.1} parent=5 // pred_check
        %p1433 = pneg %p1432
      $region90: #{tpu_custom_call.1} parent=5 // pred_check_branch
        %1435 = sbr.rel (%p1433) target = $region92
      $region91: #{tpu_custom_call.1} parent=5 // pred_region
        %s1436 = ssub.s32 %s26, 2
        // Predicated region
        $region93: #{tpu_custom_call.1} parent=91 // pred_check
          %p1437 = pneg %p254
        $region94: #{tpu_custom_call.1} parent=91 // pred_check_branch
          %1439 = sbr.rel (%p1437) target = $region96
        $region95: #{tpu_custom_call.1} parent=91 // pred_region
          %s1440 = sand.u32 %s239, 1
          %s1441 = scalar_lea.sflag [#allocation4], %s1440
          %s1442 = sand.u32 %s239, 1
          %s1443 = smul.addr %s1442, 8
          %s1444 = scalar_lea.vmem [#allocation16], %s1443
          %1445 = dma.done %s1441, 128
        $region96: #{tpu_custom_call.1} parent=91 // pred_fallthru
          _
      $region92: #{tpu_custom_call.1} parent=5 // pred_fallthru
        _
    $region6: #{tpu_custom_call.1} parent=1 // loop_footer
      %s30 = sadd.s32 1, %s26
    $region7: #{tpu_custom_call.1} parent=1 // loop_footer_branch
      %25 = sbr.rel target = $region3
    $region8: #{tpu_custom_call.1} parent=1 // loop_exit
      _
    %1446 = vsyncpa [#allocation3], 1
    %s1447 = scalar_lea.sflag [#allocation3], 1
    %1448 = vsyncpa %s1447, 1
    %1449 = vsyncpa [#allocation8], 1
    %s1450 = scalar_lea.sflag [#allocation8], 1
    %1451 = vsyncpa %s1450, 1
    %1452 = vsyncpa [#allocation11], 1
    %1453 = vsyncpa [#allocation14], 1
    %1454 = vsyncpa [#allocation4], 1
    %s1455 = scalar_lea.sflag [#allocation4], 1
    %1456 = vsyncpa %s1455, 1
    %1457 = vsyncpa [#allocation5], 1
    %s1458 = scalar_lea.sflag [#allocation5], 1
    %1459 = vsyncpa %s1458, 1

</llo_original>
